<compile_context>
chip_gen: v7x
topology: tpu7x:2x2x1
jax: 0.10.0
libtpu: 0.0.40
codegen_flags: <defaults>
</compile_context>

<pallas_src>
import functools

import jax
import jax.numpy as jnp
import numpy as np
from jax import lax
from jax.experimental import pallas as pl
from jax.experimental.pallas import tpu as pltpu

INPUT_SIZE = 1
HIDDEN = 32          # small, lane-friendly stand-in for the module default (50)
NUM_LAYERS = 2
SUBLANE = 8          # f32 sublane count


def _lstm_fc_kernel(gx_ref, w_hh0_ref, w1_ref, b1_ref, w_fc_ref, b_fc_ref,
                    out_ref, *, hidden):
    """Whole sequence in one invocation.

    gx_ref:   (T, Bp, 4H)  precomputed x@W_ih0 + b0, gates packed [i, f, o, g]
    w_hh0_ref:(H, 4H)      layer-0 recurrent weights
    w1_ref:   (2H, 4H)     fused layer-1 weights [W_ih1; W_hh1]
    b1_ref:   (1, 4H)
    w_fc_ref: (1, H)       FC head weights (row vector)
    b_fc_ref: (1, 1)
    out_ref:  (Bp, 1)
    """
    H = hidden
    T, Bp, _ = gx_ref.shape

    # Hoist constant loads out of the recurrence.
    w_hh0 = w_hh0_ref[...]
    w1 = w1_ref[...]
    b1 = b1_ref[...]

    def step(t, carry):
        h1, c1, h2, c2 = carry

        # ---- layer 0: input projection was hoisted; only the recurrent dot ----
        g0 = gx_ref[t] + jnp.dot(h1, w_hh0, preferred_element_type=jnp.float32)
        s0 = jax.nn.sigmoid(g0[:, :3 * H])          # [i | f | o] in one pass
        i0 = s0[:, 0 * H:1 * H]
        f0 = s0[:, 1 * H:2 * H]
        o0 = s0[:, 2 * H:3 * H]
        gg0 = jnp.tanh(g0[:, 3 * H:4 * H])          # candidate gate
        c1 = f0 * c1 + i0 * gg0
        h1 = o0 * jnp.tanh(c1)

        # ---- layer 1: fused ih/hh matmul on concat([h1, h2]) ----
        # (dropout on h1 is a no-op at inference time)
        g1 = (jnp.dot(jnp.concatenate([h1, h2], axis=-1), w1,
                      preferred_element_type=jnp.float32) + b1)
        s1 = jax.nn.sigmoid(g1[:, :3 * H])
        i1 = s1[:, 0 * H:1 * H]
        f1 = s1[:, 1 * H:2 * H]
        o1 = s1[:, 2 * H:3 * H]
        gg1 = jnp.tanh(g1[:, 3 * H:4 * H])
        c2 = f1 * c2 + i1 * gg1
        h2 = o1 * jnp.tanh(c2)
        return h1, c1, h2, c2

    z = jnp.zeros((Bp, H), jnp.float32)
    h1, c1, h2, c2 = lax.fori_loop(0, T, step, (z, z, z, z), unroll=True)

    # FC head with a single output feature: lane reduction on the VPU/XLU,
    # no point burning an MXU pass for N=1.  Written unconditionally.
    out_ref[...] = (jnp.sum(h2 * w_fc_ref[...], axis=-1, keepdims=True)
                    + b_fc_ref[...])


def init_params(key, input_size=INPUT_SIZE, hidden=HIDDEN):
    """Deterministic PyTorch-style uniform(-1/sqrt(H), 1/sqrt(H)) init.

    Weights are stored pre-transposed (in_dim, 4H), gate order [i, f, g, o]
    (PyTorch order).  The kernel-ready repacking is done by pack_params().
    """
    H = hidden
    k = 1.0 / np.sqrt(H)
    keys = jax.random.split(key, 12)
    u = lambda kk, shape: jax.random.uniform(kk, shape, jnp.float32, -k, k)
    params = {
        "w_ih0": u(keys[0], (input_size, 4 * H)),
        "w_hh0": u(keys[1], (H, 4 * H)),
        "b0": u(keys[2], (1, 4 * H)) + u(keys[3], (1, 4 * H)),   # b_ih + b_hh
        "w_ih1": u(keys[4], (H, 4 * H)),
        "w_hh1": u(keys[5], (H, 4 * H)),
        "b1": u(keys[6], (1, 4 * H)) + u(keys[7], (1, 4 * H)),
        "w_fc": u(keys[8], (H, 1)),
        "b_fc": u(keys[9], (1, 1)),
    }
    return params


def _reorder_gates(a, hidden):
    """PyTorch gate packing [i, f, g, o] -> kernel packing [i, f, o, g]."""
    H = hidden
    return jnp.concatenate(
        [a[..., 0:2 * H], a[..., 3 * H:4 * H], a[..., 2 * H:3 * H]], axis=-1)


def pack_params(params, hidden=HIDDEN):
    """Repack PyTorch-style params into the kernel layout."""
    H = hidden
    r = lambda a: _reorder_gates(a, H)
    return {
        "w_ih0": r(params["w_ih0"]),                                   # (I, 4H)
        "b0": r(params["b0"]),                                         # (1, 4H)
        "w_hh0": r(params["w_hh0"]),                                   # (H, 4H)
        "w1": jnp.concatenate([r(params["w_ih1"]), r(params["w_hh1"])],
                              axis=0),                                 # (2H, 4H)
        "b1": r(params["b1"]),                                         # (1, 4H)
        "w_fc": params["w_fc"].T,                                      # (1, H)
        "b_fc": params["b_fc"],                                        # (1, 1)
    }


def stock_lstm_forward(x, params, hidden=HIDDEN):
    """x: (B, T, I) float32 (PyTorch batch_first layout).  Returns (B, 1)."""
    B, T, I = x.shape
    H = hidden
    p = pack_params(params, H)

    # Pad batch to a sublane multiple so every vreg / MXU M-pass is full.
    Bp = ((B + SUBLANE - 1) // SUBLANE) * SUBLANE
    x_tbi = jnp.transpose(x.astype(jnp.float32), (1, 0, 2))   # (T, B, I)
    if Bp != B:
        x_tbi = jnp.pad(x_tbi, ((0, 0), (0, Bp - B), (0, 0)))

    # Hoisted layer-0 input projection: one well-shaped matmul for all T steps
    # instead of T degenerate K=1 dots on the sequential critical path.
    gx = (x_tbi.reshape(T * Bp, I) @ p["w_ih0"] + p["b0"]).reshape(T, Bp, 4 * H)

    vmem = pl.BlockSpec(memory_space=pltpu.MemorySpace.VMEM)
    out = pl.pallas_call(
        functools.partial(_lstm_fc_kernel, hidden=H),
        out_shape=jax.ShapeDtypeStruct((Bp, 1), jnp.float32),
        in_specs=[vmem] * 6,
        out_specs=vmem,
    )(gx, p["w_hh0"], p["w1"], p["b1"], p["w_fc"], p["b_fc"])
    return out[:B]


def stock_lstm_reference(x, params, hidden=HIDDEN):
    """Pure-JAX reference of the PyTorch forward (future_steps=1, eval mode)."""
    H = hidden
    B, T, _ = x.shape
    h1 = jnp.zeros((B, H)); c1 = jnp.zeros((B, H))
    h2 = jnp.zeros((B, H)); c2 = jnp.zeros((B, H))

    def cell(x_in, h, c, w_ih, w_hh, b):
        g = x_in @ w_ih + h @ w_hh + b
        i = jax.nn.sigmoid(g[:, 0 * H:1 * H])
        f = jax.nn.sigmoid(g[:, 1 * H:2 * H])
        gg = jnp.tanh(g[:, 2 * H:3 * H])
        o = jax.nn.sigmoid(g[:, 3 * H:4 * H])
        c = f * c + i * gg
        h = o * jnp.tanh(c)
        return h, c

    for t in range(T):
        h1, c1 = cell(x[:, t, :], h1, c1,
                      params["w_ih0"], params["w_hh0"], params["b0"])
        h2, c2 = cell(h1, h2, c2,
                      params["w_ih1"], params["w_hh1"], params["b1"])
    return h2 @ params["w_fc"] + params["b_fc"]


if __name__ == "__main__":
    key = jax.random.PRNGKey(0)
    k_param, k_x = jax.random.split(key)

    B, T, I = 2, 8, INPUT_SIZE
    params = init_params(k_param)
    x = jax.random.normal(k_x, (B, T, I), dtype=jnp.float32)

    out = stock_lstm_forward(x, params)
    out = jax.block_until_ready(out)

    ref = stock_lstm_reference(x, params)
    assert out.shape == (B, 1), out.shape
    np.testing.assert_allclose(np.asarray(out), np.asarray(ref),
                               rtol=1e-2, atol=1e-2)
    print("KERNEL_OK")
</pallas_src>

<mosaic_0001>
module attributes {stable_mosaic.version = 11 : i64} {
  func.func @_lstm_fc_kernel(%arg0: memref<8x8x128xf32, #tpu.memory_space<vmem>>, %arg1: memref<32x128xf32, #tpu.memory_space<vmem>>, %arg2: memref<64x128xf32, #tpu.memory_space<vmem>>, %arg3: memref<1x128xf32, #tpu.memory_space<vmem>>, %arg4: memref<1x32xf32, #tpu.memory_space<vmem>>, %arg5: memref<1x1xf32, #tpu.memory_space<vmem>>, %arg6: memref<8x1xf32, #tpu.memory_space<vmem>>) attributes {dimension_semantics = [], scalar_prefetch = 0 : i64, scratch_operands = 0 : i64, tpu.core_type = #tpu.core_type<tc>} {
    %c0 = arith.constant 0 : index
    %c0_0 = arith.constant 0 : index
    %0 = vector.load %arg1[%c0, %c0_0] : memref<32x128xf32, #tpu.memory_space<vmem>>, vector<32x128xf32>
    %c0_1 = arith.constant 0 : index
    %c0_2 = arith.constant 0 : index
    %1 = vector.load %arg2[%c0_1, %c0_2] : memref<64x128xf32, #tpu.memory_space<vmem>>, vector<64x128xf32>
    %c0_3 = arith.constant 0 : index
    %c0_4 = arith.constant 0 : index
    %2 = vector.load %arg3[%c0_3, %c0_4] : memref<1x128xf32, #tpu.memory_space<vmem>>, vector<1x128xf32>
    %cst = arith.constant 0.000000e+00 : f32
    %3 = vector.broadcast %cst : f32 to vector<8x32xf32>
    %c0_i32 = arith.constant 0 : i32
    %4 = arith.index_cast %c0_i32 : i32 to index
    %c0_5 = arith.constant 0 : index
    %c0_6 = arith.constant 0 : index
    %5 = vector.load %arg0[%4, %c0_5, %c0_6] : memref<8x8x128xf32, #tpu.memory_space<vmem>>, vector<1x8x128xf32>
    %6 = vector.shape_cast %5 : vector<1x8x128xf32> to vector<8x128xf32>
    %cst_7 = arith.constant dense<0.000000e+00> : vector<8x128xf32>
    %7 = tpu.matmul %3, %0, %cst_7 {dimension_numbers = #tpu.dot_dimension_numbers<[1], [0], [0], [1], [0, 0, 1, 1], [], []>} : vector<8x32xf32>, vector<32x128xf32>, vector<8x128xf32> -> vector<8x128xf32>
    %8 = arith.addf %6, %7 : vector<8x128xf32>
    %9 = vector.extract_strided_slice %8 {offsets = [0, 0], sizes = [8, 96], strides = [1, 1]} : vector<8x128xf32> to vector<8x96xf32>
    %10 = arith.negf %9 : vector<8x96xf32>
    %11 = math.exp %10 : vector<8x96xf32>
    %cst_8 = arith.constant 1.000000e+00 : f32
    %12 = vector.broadcast %cst_8 : f32 to vector<8x96xf32>
    %13 = arith.addf %12, %11 : vector<8x96xf32>
    %14 = arith.divf %12, %13 : vector<8x96xf32>
    %15 = vector.extract_strided_slice %14 {offsets = [0, 0], sizes = [8, 32], strides = [1, 1]} : vector<8x96xf32> to vector<8x32xf32>
    %16 = vector.extract_strided_slice %14 {offsets = [0, 32], sizes = [8, 32], strides = [1, 1]} : vector<8x96xf32> to vector<8x32xf32>
    %17 = vector.extract_strided_slice %14 {offsets = [0, 64], sizes = [8, 32], strides = [1, 1]} : vector<8x96xf32> to vector<8x32xf32>
    %18 = vector.extract_strided_slice %8 {offsets = [0, 96], sizes = [8, 32], strides = [1, 1]} : vector<8x128xf32> to vector<8x32xf32>
    %19 = math.tanh %18 : vector<8x32xf32>
    %20 = arith.mulf %16, %3 : vector<8x32xf32>
    %21 = arith.mulf %15, %19 : vector<8x32xf32>
    %22 = arith.addf %20, %21 : vector<8x32xf32>
    %23 = math.tanh %22 : vector<8x32xf32>
    %24 = arith.mulf %17, %23 : vector<8x32xf32>
    %25 = tpu.concatenate %24, %3 in 1 : vector<8x32xf32>, vector<8x32xf32> -> vector<8x64xf32>
    %cst_9 = arith.constant dense<0.000000e+00> : vector<8x128xf32>
    %26 = tpu.matmul %25, %1, %cst_9 {dimension_numbers = #tpu.dot_dimension_numbers<[1], [0], [0], [1], [0, 0, 1, 1], [], []>} : vector<8x64xf32>, vector<64x128xf32>, vector<8x128xf32> -> vector<8x128xf32>
    %27 = vector.broadcast %2 : vector<1x128xf32> to vector<8x128xf32>
    %28 = arith.addf %26, %27 : vector<8x128xf32>
    %29 = vector.extract_strided_slice %28 {offsets = [0, 0], sizes = [8, 96], strides = [1, 1]} : vector<8x128xf32> to vector<8x96xf32>
    %30 = arith.negf %29 : vector<8x96xf32>
    %31 = math.exp %30 : vector<8x96xf32>
    %cst_10 = arith.constant 1.000000e+00 : f32
    %32 = vector.broadcast %cst_10 : f32 to vector<8x96xf32>
    %33 = arith.addf %32, %31 : vector<8x96xf32>
    %34 = arith.divf %32, %33 : vector<8x96xf32>
    %35 = vector.extract_strided_slice %34 {offsets = [0, 0], sizes = [8, 32], strides = [1, 1]} : vector<8x96xf32> to vector<8x32xf32>
    %36 = vector.extract_strided_slice %34 {offsets = [0, 32], sizes = [8, 32], strides = [1, 1]} : vector<8x96xf32> to vector<8x32xf32>
    %37 = vector.extract_strided_slice %34 {offsets = [0, 64], sizes = [8, 32], strides = [1, 1]} : vector<8x96xf32> to vector<8x32xf32>
    %38 = vector.extract_strided_slice %28 {offsets = [0, 96], sizes = [8, 32], strides = [1, 1]} : vector<8x128xf32> to vector<8x32xf32>
    %39 = math.tanh %38 : vector<8x32xf32>
    %40 = arith.mulf %36, %3 : vector<8x32xf32>
    %41 = arith.mulf %35, %39 : vector<8x32xf32>
    %42 = arith.addf %40, %41 : vector<8x32xf32>
    %43 = math.tanh %42 : vector<8x32xf32>
    %44 = arith.mulf %37, %43 : vector<8x32xf32>
    %c1_i32 = arith.constant 1 : i32
    %45 = arith.index_cast %c1_i32 : i32 to index
    %c0_11 = arith.constant 0 : index
    %c0_12 = arith.constant 0 : index
    %46 = vector.load %arg0[%45, %c0_11, %c0_12] : memref<8x8x128xf32, #tpu.memory_space<vmem>>, vector<1x8x128xf32>
    %47 = vector.shape_cast %46 : vector<1x8x128xf32> to vector<8x128xf32>
    %cst_13 = arith.constant dense<0.000000e+00> : vector<8x128xf32>
    %48 = tpu.matmul %24, %0, %cst_13 {dimension_numbers = #tpu.dot_dimension_numbers<[1], [0], [0], [1], [0, 0, 1, 1], [], []>} : vector<8x32xf32>, vector<32x128xf32>, vector<8x128xf32> -> vector<8x128xf32>
    %49 = arith.addf %47, %48 : vector<8x128xf32>
    %50 = vector.extract_strided_slice %49 {offsets = [0, 0], sizes = [8, 96], strides = [1, 1]} : vector<8x128xf32> to vector<8x96xf32>
    %51 = arith.negf %50 : vector<8x96xf32>
    %52 = math.exp %51 : vector<8x96xf32>
    %cst_14 = arith.constant 1.000000e+00 : f32
    %53 = vector.broadcast %cst_14 : f32 to vector<8x96xf32>
    %54 = arith.addf %53, %52 : vector<8x96xf32>
    %55 = arith.divf %53, %54 : vector<8x96xf32>
    %56 = vector.extract_strided_slice %55 {offsets = [0, 0], sizes = [8, 32], strides = [1, 1]} : vector<8x96xf32> to vector<8x32xf32>
    %57 = vector.extract_strided_slice %55 {offsets = [0, 32], sizes = [8, 32], strides = [1, 1]} : vector<8x96xf32> to vector<8x32xf32>
    %58 = vector.extract_strided_slice %55 {offsets = [0, 64], sizes = [8, 32], strides = [1, 1]} : vector<8x96xf32> to vector<8x32xf32>
    %59 = vector.extract_strided_slice %49 {offsets = [0, 96], sizes = [8, 32], strides = [1, 1]} : vector<8x128xf32> to vector<8x32xf32>
    %60 = math.tanh %59 : vector<8x32xf32>
    %61 = arith.mulf %57, %22 : vector<8x32xf32>
    %62 = arith.mulf %56, %60 : vector<8x32xf32>
    %63 = arith.addf %61, %62 : vector<8x32xf32>
    %64 = math.tanh %63 : vector<8x32xf32>
    %65 = arith.mulf %58, %64 : vector<8x32xf32>
    %66 = tpu.concatenate %65, %44 in 1 : vector<8x32xf32>, vector<8x32xf32> -> vector<8x64xf32>
    %cst_15 = arith.constant dense<0.000000e+00> : vector<8x128xf32>
    %67 = tpu.matmul %66, %1, %cst_15 {dimension_numbers = #tpu.dot_dimension_numbers<[1], [0], [0], [1], [0, 0, 1, 1], [], []>} : vector<8x64xf32>, vector<64x128xf32>, vector<8x128xf32> -> vector<8x128xf32>
    %68 = vector.broadcast %2 : vector<1x128xf32> to vector<8x128xf32>
    %69 = arith.addf %67, %68 : vector<8x128xf32>
    %70 = vector.extract_strided_slice %69 {offsets = [0, 0], sizes = [8, 96], strides = [1, 1]} : vector<8x128xf32> to vector<8x96xf32>
    %71 = arith.negf %70 : vector<8x96xf32>
    %72 = math.exp %71 : vector<8x96xf32>
    %cst_16 = arith.constant 1.000000e+00 : f32
    %73 = vector.broadcast %cst_16 : f32 to vector<8x96xf32>
    %74 = arith.addf %73, %72 : vector<8x96xf32>
    %75 = arith.divf %73, %74 : vector<8x96xf32>
    %76 = vector.extract_strided_slice %75 {offsets = [0, 0], sizes = [8, 32], strides = [1, 1]} : vector<8x96xf32> to vector<8x32xf32>
    %77 = vector.extract_strided_slice %75 {offsets = [0, 32], sizes = [8, 32], strides = [1, 1]} : vector<8x96xf32> to vector<8x32xf32>
    %78 = vector.extract_strided_slice %75 {offsets = [0, 64], sizes = [8, 32], strides = [1, 1]} : vector<8x96xf32> to vector<8x32xf32>
    %79 = vector.extract_strided_slice %69 {offsets = [0, 96], sizes = [8, 32], strides = [1, 1]} : vector<8x128xf32> to vector<8x32xf32>
    %80 = math.tanh %79 : vector<8x32xf32>
    %81 = arith.mulf %77, %42 : vector<8x32xf32>
    %82 = arith.mulf %76, %80 : vector<8x32xf32>
    %83 = arith.addf %81, %82 : vector<8x32xf32>
    %84 = math.tanh %83 : vector<8x32xf32>
    %85 = arith.mulf %78, %84 : vector<8x32xf32>
    %c2_i32 = arith.constant 2 : i32
    %86 = arith.index_cast %c2_i32 : i32 to index
    %c0_17 = arith.constant 0 : index
    %c0_18 = arith.constant 0 : index
    %87 = vector.load %arg0[%86, %c0_17, %c0_18] : memref<8x8x128xf32, #tpu.memory_space<vmem>>, vector<1x8x128xf32>
    %88 = vector.shape_cast %87 : vector<1x8x128xf32> to vector<8x128xf32>
    %cst_19 = arith.constant dense<0.000000e+00> : vector<8x128xf32>
    %89 = tpu.matmul %65, %0, %cst_19 {dimension_numbers = #tpu.dot_dimension_numbers<[1], [0], [0], [1], [0, 0, 1, 1], [], []>} : vector<8x32xf32>, vector<32x128xf32>, vector<8x128xf32> -> vector<8x128xf32>
    %90 = arith.addf %88, %89 : vector<8x128xf32>
    %91 = vector.extract_strided_slice %90 {offsets = [0, 0], sizes = [8, 96], strides = [1, 1]} : vector<8x128xf32> to vector<8x96xf32>
    %92 = arith.negf %91 : vector<8x96xf32>
    %93 = math.exp %92 : vector<8x96xf32>
    %cst_20 = arith.constant 1.000000e+00 : f32
    %94 = vector.broadcast %cst_20 : f32 to vector<8x96xf32>
    %95 = arith.addf %94, %93 : vector<8x96xf32>
    %96 = arith.divf %94, %95 : vector<8x96xf32>
    %97 = vector.extract_strided_slice %96 {offsets = [0, 0], sizes = [8, 32], strides = [1, 1]} : vector<8x96xf32> to vector<8x32xf32>
    %98 = vector.extract_strided_slice %96 {offsets = [0, 32], sizes = [8, 32], strides = [1, 1]} : vector<8x96xf32> to vector<8x32xf32>
    %99 = vector.extract_strided_slice %96 {offsets = [0, 64], sizes = [8, 32], strides = [1, 1]} : vector<8x96xf32> to vector<8x32xf32>
    %100 = vector.extract_strided_slice %90 {offsets = [0, 96], sizes = [8, 32], strides = [1, 1]} : vector<8x128xf32> to vector<8x32xf32>
    %101 = math.tanh %100 : vector<8x32xf32>
    %102 = arith.mulf %98, %63 : vector<8x32xf32>
    %103 = arith.mulf %97, %101 : vector<8x32xf32>
    %104 = arith.addf %102, %103 : vector<8x32xf32>
    %105 = math.tanh %104 : vector<8x32xf32>
    %106 = arith.mulf %99, %105 : vector<8x32xf32>
    %107 = tpu.concatenate %106, %85 in 1 : vector<8x32xf32>, vector<8x32xf32> -> vector<8x64xf32>
    %cst_21 = arith.constant dense<0.000000e+00> : vector<8x128xf32>
    %108 = tpu.matmul %107, %1, %cst_21 {dimension_numbers = #tpu.dot_dimension_numbers<[1], [0], [0], [1], [0, 0, 1, 1], [], []>} : vector<8x64xf32>, vector<64x128xf32>, vector<8x128xf32> -> vector<8x128xf32>
    %109 = vector.broadcast %2 : vector<1x128xf32> to vector<8x128xf32>
    %110 = arith.addf %108, %109 : vector<8x128xf32>
    %111 = vector.extract_strided_slice %110 {offsets = [0, 0], sizes = [8, 96], strides = [1, 1]} : vector<8x128xf32> to vector<8x96xf32>
    %112 = arith.negf %111 : vector<8x96xf32>
    %113 = math.exp %112 : vector<8x96xf32>
    %cst_22 = arith.constant 1.000000e+00 : f32
    %114 = vector.broadcast %cst_22 : f32 to vector<8x96xf32>
    %115 = arith.addf %114, %113 : vector<8x96xf32>
    %116 = arith.divf %114, %115 : vector<8x96xf32>
    %117 = vector.extract_strided_slice %116 {offsets = [0, 0], sizes = [8, 32], strides = [1, 1]} : vector<8x96xf32> to vector<8x32xf32>
    %118 = vector.extract_strided_slice %116 {offsets = [0, 32], sizes = [8, 32], strides = [1, 1]} : vector<8x96xf32> to vector<8x32xf32>
    %119 = vector.extract_strided_slice %116 {offsets = [0, 64], sizes = [8, 32], strides = [1, 1]} : vector<8x96xf32> to vector<8x32xf32>
    %120 = vector.extract_strided_slice %110 {offsets = [0, 96], sizes = [8, 32], strides = [1, 1]} : vector<8x128xf32> to vector<8x32xf32>
    %121 = math.tanh %120 : vector<8x32xf32>
    %122 = arith.mulf %118, %83 : vector<8x32xf32>
    %123 = arith.mulf %117, %121 : vector<8x32xf32>
    %124 = arith.addf %122, %123 : vector<8x32xf32>
    %125 = math.tanh %124 : vector<8x32xf32>
    %126 = arith.mulf %119, %125 : vector<8x32xf32>
    %c3_i32 = arith.constant 3 : i32
    %127 = arith.index_cast %c3_i32 : i32 to index
    %c0_23 = arith.constant 0 : index
    %c0_24 = arith.constant 0 : index
    %128 = vector.load %arg0[%127, %c0_23, %c0_24] : memref<8x8x128xf32, #tpu.memory_space<vmem>>, vector<1x8x128xf32>
    %129 = vector.shape_cast %128 : vector<1x8x128xf32> to vector<8x128xf32>
    %cst_25 = arith.constant dense<0.000000e+00> : vector<8x128xf32>
    %130 = tpu.matmul %106, %0, %cst_25 {dimension_numbers = #tpu.dot_dimension_numbers<[1], [0], [0], [1], [0, 0, 1, 1], [], []>} : vector<8x32xf32>, vector<32x128xf32>, vector<8x128xf32> -> vector<8x128xf32>
    %131 = arith.addf %129, %130 : vector<8x128xf32>
    %132 = vector.extract_strided_slice %131 {offsets = [0, 0], sizes = [8, 96], strides = [1, 1]} : vector<8x128xf32> to vector<8x96xf32>
    %133 = arith.negf %132 : vector<8x96xf32>
    %134 = math.exp %133 : vector<8x96xf32>
    %cst_26 = arith.constant 1.000000e+00 : f32
    %135 = vector.broadcast %cst_26 : f32 to vector<8x96xf32>
    %136 = arith.addf %135, %134 : vector<8x96xf32>
    %137 = arith.divf %135, %136 : vector<8x96xf32>
    %138 = vector.extract_strided_slice %137 {offsets = [0, 0], sizes = [8, 32], strides = [1, 1]} : vector<8x96xf32> to vector<8x32xf32>
    %139 = vector.extract_strided_slice %137 {offsets = [0, 32], sizes = [8, 32], strides = [1, 1]} : vector<8x96xf32> to vector<8x32xf32>
    %140 = vector.extract_strided_slice %137 {offsets = [0, 64], sizes = [8, 32], strides = [1, 1]} : vector<8x96xf32> to vector<8x32xf32>
    %141 = vector.extract_strided_slice %131 {offsets = [0, 96], sizes = [8, 32], strides = [1, 1]} : vector<8x128xf32> to vector<8x32xf32>
    %142 = math.tanh %141 : vector<8x32xf32>
    %143 = arith.mulf %139, %104 : vector<8x32xf32>
    %144 = arith.mulf %138, %142 : vector<8x32xf32>
    %145 = arith.addf %143, %144 : vector<8x32xf32>
    %146 = math.tanh %145 : vector<8x32xf32>
    %147 = arith.mulf %140, %146 : vector<8x32xf32>
    %148 = tpu.concatenate %147, %126 in 1 : vector<8x32xf32>, vector<8x32xf32> -> vector<8x64xf32>
    %cst_27 = arith.constant dense<0.000000e+00> : vector<8x128xf32>
    %149 = tpu.matmul %148, %1, %cst_27 {dimension_numbers = #tpu.dot_dimension_numbers<[1], [0], [0], [1], [0, 0, 1, 1], [], []>} : vector<8x64xf32>, vector<64x128xf32>, vector<8x128xf32> -> vector<8x128xf32>
    %150 = vector.broadcast %2 : vector<1x128xf32> to vector<8x128xf32>
    %151 = arith.addf %149, %150 : vector<8x128xf32>
    %152 = vector.extract_strided_slice %151 {offsets = [0, 0], sizes = [8, 96], strides = [1, 1]} : vector<8x128xf32> to vector<8x96xf32>
    %153 = arith.negf %152 : vector<8x96xf32>
    %154 = math.exp %153 : vector<8x96xf32>
    %cst_28 = arith.constant 1.000000e+00 : f32
    %155 = vector.broadcast %cst_28 : f32 to vector<8x96xf32>
    %156 = arith.addf %155, %154 : vector<8x96xf32>
    %157 = arith.divf %155, %156 : vector<8x96xf32>
    %158 = vector.extract_strided_slice %157 {offsets = [0, 0], sizes = [8, 32], strides = [1, 1]} : vector<8x96xf32> to vector<8x32xf32>
    %159 = vector.extract_strided_slice %157 {offsets = [0, 32], sizes = [8, 32], strides = [1, 1]} : vector<8x96xf32> to vector<8x32xf32>
    %160 = vector.extract_strided_slice %157 {offsets = [0, 64], sizes = [8, 32], strides = [1, 1]} : vector<8x96xf32> to vector<8x32xf32>
    %161 = vector.extract_strided_slice %151 {offsets = [0, 96], sizes = [8, 32], strides = [1, 1]} : vector<8x128xf32> to vector<8x32xf32>
    %162 = math.tanh %161 : vector<8x32xf32>
    %163 = arith.mulf %159, %124 : vector<8x32xf32>
    %164 = arith.mulf %158, %162 : vector<8x32xf32>
    %165 = arith.addf %163, %164 : vector<8x32xf32>
    %166 = math.tanh %165 : vector<8x32xf32>
    %167 = arith.mulf %160, %166 : vector<8x32xf32>
    %c4_i32 = arith.constant 4 : i32
    %168 = arith.index_cast %c4_i32 : i32 to index
    %c0_29 = arith.constant 0 : index
    %c0_30 = arith.constant 0 : index
    %169 = vector.load %arg0[%168, %c0_29, %c0_30] : memref<8x8x128xf32, #tpu.memory_space<vmem>>, vector<1x8x128xf32>
    %170 = vector.shape_cast %169 : vector<1x8x128xf32> to vector<8x128xf32>
    %cst_31 = arith.constant dense<0.000000e+00> : vector<8x128xf32>
    %171 = tpu.matmul %147, %0, %cst_31 {dimension_numbers = #tpu.dot_dimension_numbers<[1], [0], [0], [1], [0, 0, 1, 1], [], []>} : vector<8x32xf32>, vector<32x128xf32>, vector<8x128xf32> -> vector<8x128xf32>
    %172 = arith.addf %170, %171 : vector<8x128xf32>
    %173 = vector.extract_strided_slice %172 {offsets = [0, 0], sizes = [8, 96], strides = [1, 1]} : vector<8x128xf32> to vector<8x96xf32>
    %174 = arith.negf %173 : vector<8x96xf32>
    %175 = math.exp %174 : vector<8x96xf32>
    %cst_32 = arith.constant 1.000000e+00 : f32
    %176 = vector.broadcast %cst_32 : f32 to vector<8x96xf32>
    %177 = arith.addf %176, %175 : vector<8x96xf32>
    %178 = arith.divf %176, %177 : vector<8x96xf32>
    %179 = vector.extract_strided_slice %178 {offsets = [0, 0], sizes = [8, 32], strides = [1, 1]} : vector<8x96xf32> to vector<8x32xf32>
    %180 = vector.extract_strided_slice %178 {offsets = [0, 32], sizes = [8, 32], strides = [1, 1]} : vector<8x96xf32> to vector<8x32xf32>
    %181 = vector.extract_strided_slice %178 {offsets = [0, 64], sizes = [8, 32], strides = [1, 1]} : vector<8x96xf32> to vector<8x32xf32>
    %182 = vector.extract_strided_slice %172 {offsets = [0, 96], sizes = [8, 32], strides = [1, 1]} : vector<8x128xf32> to vector<8x32xf32>
    %183 = math.tanh %182 : vector<8x32xf32>
    %184 = arith.mulf %180, %145 : vector<8x32xf32>
    %185 = arith.mulf %179, %183 : vector<8x32xf32>
    %186 = arith.addf %184, %185 : vector<8x32xf32>
    %187 = math.tanh %186 : vector<8x32xf32>
    %188 = arith.mulf %181, %187 : vector<8x32xf32>
    %189 = tpu.concatenate %188, %167 in 1 : vector<8x32xf32>, vector<8x32xf32> -> vector<8x64xf32>
    %cst_33 = arith.constant dense<0.000000e+00> : vector<8x128xf32>
    %190 = tpu.matmul %189, %1, %cst_33 {dimension_numbers = #tpu.dot_dimension_numbers<[1], [0], [0], [1], [0, 0, 1, 1], [], []>} : vector<8x64xf32>, vector<64x128xf32>, vector<8x128xf32> -> vector<8x128xf32>
    %191 = vector.broadcast %2 : vector<1x128xf32> to vector<8x128xf32>
    %192 = arith.addf %190, %191 : vector<8x128xf32>
    %193 = vector.extract_strided_slice %192 {offsets = [0, 0], sizes = [8, 96], strides = [1, 1]} : vector<8x128xf32> to vector<8x96xf32>
    %194 = arith.negf %193 : vector<8x96xf32>
    %195 = math.exp %194 : vector<8x96xf32>
    %cst_34 = arith.constant 1.000000e+00 : f32
    %196 = vector.broadcast %cst_34 : f32 to vector<8x96xf32>
    %197 = arith.addf %196, %195 : vector<8x96xf32>
    %198 = arith.divf %196, %197 : vector<8x96xf32>
    %199 = vector.extract_strided_slice %198 {offsets = [0, 0], sizes = [8, 32], strides = [1, 1]} : vector<8x96xf32> to vector<8x32xf32>
    %200 = vector.extract_strided_slice %198 {offsets = [0, 32], sizes = [8, 32], strides = [1, 1]} : vector<8x96xf32> to vector<8x32xf32>
    %201 = vector.extract_strided_slice %198 {offsets = [0, 64], sizes = [8, 32], strides = [1, 1]} : vector<8x96xf32> to vector<8x32xf32>
    %202 = vector.extract_strided_slice %192 {offsets = [0, 96], sizes = [8, 32], strides = [1, 1]} : vector<8x128xf32> to vector<8x32xf32>
    %203 = math.tanh %202 : vector<8x32xf32>
    %204 = arith.mulf %200, %165 : vector<8x32xf32>
    %205 = arith.mulf %199, %203 : vector<8x32xf32>
    %206 = arith.addf %204, %205 : vector<8x32xf32>
    %207 = math.tanh %206 : vector<8x32xf32>
    %208 = arith.mulf %201, %207 : vector<8x32xf32>
    %c5_i32 = arith.constant 5 : i32
    %209 = arith.index_cast %c5_i32 : i32 to index
    %c0_35 = arith.constant 0 : index
    %c0_36 = arith.constant 0 : index
    %210 = vector.load %arg0[%209, %c0_35, %c0_36] : memref<8x8x128xf32, #tpu.memory_space<vmem>>, vector<1x8x128xf32>
    %211 = vector.shape_cast %210 : vector<1x8x128xf32> to vector<8x128xf32>
    %cst_37 = arith.constant dense<0.000000e+00> : vector<8x128xf32>
    %212 = tpu.matmul %188, %0, %cst_37 {dimension_numbers = #tpu.dot_dimension_numbers<[1], [0], [0], [1], [0, 0, 1, 1], [], []>} : vector<8x32xf32>, vector<32x128xf32>, vector<8x128xf32> -> vector<8x128xf32>
    %213 = arith.addf %211, %212 : vector<8x128xf32>
    %214 = vector.extract_strided_slice %213 {offsets = [0, 0], sizes = [8, 96], strides = [1, 1]} : vector<8x128xf32> to vector<8x96xf32>
    %215 = arith.negf %214 : vector<8x96xf32>
    %216 = math.exp %215 : vector<8x96xf32>
    %cst_38 = arith.constant 1.000000e+00 : f32
    %217 = vector.broadcast %cst_38 : f32 to vector<8x96xf32>
    %218 = arith.addf %217, %216 : vector<8x96xf32>
    %219 = arith.divf %217, %218 : vector<8x96xf32>
    %220 = vector.extract_strided_slice %219 {offsets = [0, 0], sizes = [8, 32], strides = [1, 1]} : vector<8x96xf32> to vector<8x32xf32>
    %221 = vector.extract_strided_slice %219 {offsets = [0, 32], sizes = [8, 32], strides = [1, 1]} : vector<8x96xf32> to vector<8x32xf32>
    %222 = vector.extract_strided_slice %219 {offsets = [0, 64], sizes = [8, 32], strides = [1, 1]} : vector<8x96xf32> to vector<8x32xf32>
    %223 = vector.extract_strided_slice %213 {offsets = [0, 96], sizes = [8, 32], strides = [1, 1]} : vector<8x128xf32> to vector<8x32xf32>
    %224 = math.tanh %223 : vector<8x32xf32>
    %225 = arith.mulf %221, %186 : vector<8x32xf32>
    %226 = arith.mulf %220, %224 : vector<8x32xf32>
    %227 = arith.addf %225, %226 : vector<8x32xf32>
    %228 = math.tanh %227 : vector<8x32xf32>
    %229 = arith.mulf %222, %228 : vector<8x32xf32>
    %230 = tpu.concatenate %229, %208 in 1 : vector<8x32xf32>, vector<8x32xf32> -> vector<8x64xf32>
    %cst_39 = arith.constant dense<0.000000e+00> : vector<8x128xf32>
    %231 = tpu.matmul %230, %1, %cst_39 {dimension_numbers = #tpu.dot_dimension_numbers<[1], [0], [0], [1], [0, 0, 1, 1], [], []>} : vector<8x64xf32>, vector<64x128xf32>, vector<8x128xf32> -> vector<8x128xf32>
    %232 = vector.broadcast %2 : vector<1x128xf32> to vector<8x128xf32>
    %233 = arith.addf %231, %232 : vector<8x128xf32>
    %234 = vector.extract_strided_slice %233 {offsets = [0, 0], sizes = [8, 96], strides = [1, 1]} : vector<8x128xf32> to vector<8x96xf32>
    %235 = arith.negf %234 : vector<8x96xf32>
    %236 = math.exp %235 : vector<8x96xf32>
    %cst_40 = arith.constant 1.000000e+00 : f32
    %237 = vector.broadcast %cst_40 : f32 to vector<8x96xf32>
    %238 = arith.addf %237, %236 : vector<8x96xf32>
    %239 = arith.divf %237, %238 : vector<8x96xf32>
    %240 = vector.extract_strided_slice %239 {offsets = [0, 0], sizes = [8, 32], strides = [1, 1]} : vector<8x96xf32> to vector<8x32xf32>
    %241 = vector.extract_strided_slice %239 {offsets = [0, 32], sizes = [8, 32], strides = [1, 1]} : vector<8x96xf32> to vector<8x32xf32>
    %242 = vector.extract_strided_slice %239 {offsets = [0, 64], sizes = [8, 32], strides = [1, 1]} : vector<8x96xf32> to vector<8x32xf32>
    %243 = vector.extract_strided_slice %233 {offsets = [0, 96], sizes = [8, 32], strides = [1, 1]} : vector<8x128xf32> to vector<8x32xf32>
    %244 = math.tanh %243 : vector<8x32xf32>
    %245 = arith.mulf %241, %206 : vector<8x32xf32>
    %246 = arith.mulf %240, %244 : vector<8x32xf32>
    %247 = arith.addf %245, %246 : vector<8x32xf32>
    %248 = math.tanh %247 : vector<8x32xf32>
    %249 = arith.mulf %242, %248 : vector<8x32xf32>
    %c6_i32 = arith.constant 6 : i32
    %250 = arith.index_cast %c6_i32 : i32 to index
    %c0_41 = arith.constant 0 : index
    %c0_42 = arith.constant 0 : index
    %251 = vector.load %arg0[%250, %c0_41, %c0_42] : memref<8x8x128xf32, #tpu.memory_space<vmem>>, vector<1x8x128xf32>
    %252 = vector.shape_cast %251 : vector<1x8x128xf32> to vector<8x128xf32>
    %cst_43 = arith.constant dense<0.000000e+00> : vector<8x128xf32>
    %253 = tpu.matmul %229, %0, %cst_43 {dimension_numbers = #tpu.dot_dimension_numbers<[1], [0], [0], [1], [0, 0, 1, 1], [], []>} : vector<8x32xf32>, vector<32x128xf32>, vector<8x128xf32> -> vector<8x128xf32>
    %254 = arith.addf %252, %253 : vector<8x128xf32>
    %255 = vector.extract_strided_slice %254 {offsets = [0, 0], sizes = [8, 96], strides = [1, 1]} : vector<8x128xf32> to vector<8x96xf32>
    %256 = arith.negf %255 : vector<8x96xf32>
    %257 = math.exp %256 : vector<8x96xf32>
    %cst_44 = arith.constant 1.000000e+00 : f32
    %258 = vector.broadcast %cst_44 : f32 to vector<8x96xf32>
    %259 = arith.addf %258, %257 : vector<8x96xf32>
    %260 = arith.divf %258, %259 : vector<8x96xf32>
    %261 = vector.extract_strided_slice %260 {offsets = [0, 0], sizes = [8, 32], strides = [1, 1]} : vector<8x96xf32> to vector<8x32xf32>
    %262 = vector.extract_strided_slice %260 {offsets = [0, 32], sizes = [8, 32], strides = [1, 1]} : vector<8x96xf32> to vector<8x32xf32>
    %263 = vector.extract_strided_slice %260 {offsets = [0, 64], sizes = [8, 32], strides = [1, 1]} : vector<8x96xf32> to vector<8x32xf32>
    %264 = vector.extract_strided_slice %254 {offsets = [0, 96], sizes = [8, 32], strides = [1, 1]} : vector<8x128xf32> to vector<8x32xf32>
    %265 = math.tanh %264 : vector<8x32xf32>
    %266 = arith.mulf %262, %227 : vector<8x32xf32>
    %267 = arith.mulf %261, %265 : vector<8x32xf32>
    %268 = arith.addf %266, %267 : vector<8x32xf32>
    %269 = math.tanh %268 : vector<8x32xf32>
    %270 = arith.mulf %263, %269 : vector<8x32xf32>
    %271 = tpu.concatenate %270, %249 in 1 : vector<8x32xf32>, vector<8x32xf32> -> vector<8x64xf32>
    %cst_45 = arith.constant dense<0.000000e+00> : vector<8x128xf32>
    %272 = tpu.matmul %271, %1, %cst_45 {dimension_numbers = #tpu.dot_dimension_numbers<[1], [0], [0], [1], [0, 0, 1, 1], [], []>} : vector<8x64xf32>, vector<64x128xf32>, vector<8x128xf32> -> vector<8x128xf32>
    %273 = vector.broadcast %2 : vector<1x128xf32> to vector<8x128xf32>
    %274 = arith.addf %272, %273 : vector<8x128xf32>
    %275 = vector.extract_strided_slice %274 {offsets = [0, 0], sizes = [8, 96], strides = [1, 1]} : vector<8x128xf32> to vector<8x96xf32>
    %276 = arith.negf %275 : vector<8x96xf32>
    %277 = math.exp %276 : vector<8x96xf32>
    %cst_46 = arith.constant 1.000000e+00 : f32
    %278 = vector.broadcast %cst_46 : f32 to vector<8x96xf32>
    %279 = arith.addf %278, %277 : vector<8x96xf32>
    %280 = arith.divf %278, %279 : vector<8x96xf32>
    %281 = vector.extract_strided_slice %280 {offsets = [0, 0], sizes = [8, 32], strides = [1, 1]} : vector<8x96xf32> to vector<8x32xf32>
    %282 = vector.extract_strided_slice %280 {offsets = [0, 32], sizes = [8, 32], strides = [1, 1]} : vector<8x96xf32> to vector<8x32xf32>
    %283 = vector.extract_strided_slice %280 {offsets = [0, 64], sizes = [8, 32], strides = [1, 1]} : vector<8x96xf32> to vector<8x32xf32>
    %284 = vector.extract_strided_slice %274 {offsets = [0, 96], sizes = [8, 32], strides = [1, 1]} : vector<8x128xf32> to vector<8x32xf32>
    %285 = math.tanh %284 : vector<8x32xf32>
    %286 = arith.mulf %282, %247 : vector<8x32xf32>
    %287 = arith.mulf %281, %285 : vector<8x32xf32>
    %288 = arith.addf %286, %287 : vector<8x32xf32>
    %289 = math.tanh %288 : vector<8x32xf32>
    %290 = arith.mulf %283, %289 : vector<8x32xf32>
    %c7_i32 = arith.constant 7 : i32
    %291 = arith.index_cast %c7_i32 : i32 to index
    %c0_47 = arith.constant 0 : index
    %c0_48 = arith.constant 0 : index
    %292 = vector.load %arg0[%291, %c0_47, %c0_48] : memref<8x8x128xf32, #tpu.memory_space<vmem>>, vector<1x8x128xf32>
    %293 = vector.shape_cast %292 : vector<1x8x128xf32> to vector<8x128xf32>
    %cst_49 = arith.constant dense<0.000000e+00> : vector<8x128xf32>
    %294 = tpu.matmul %270, %0, %cst_49 {dimension_numbers = #tpu.dot_dimension_numbers<[1], [0], [0], [1], [0, 0, 1, 1], [], []>} : vector<8x32xf32>, vector<32x128xf32>, vector<8x128xf32> -> vector<8x128xf32>
    %295 = arith.addf %293, %294 : vector<8x128xf32>
    %296 = vector.extract_strided_slice %295 {offsets = [0, 0], sizes = [8, 96], strides = [1, 1]} : vector<8x128xf32> to vector<8x96xf32>
    %297 = arith.negf %296 : vector<8x96xf32>
    %298 = math.exp %297 : vector<8x96xf32>
    %cst_50 = arith.constant 1.000000e+00 : f32
    %299 = vector.broadcast %cst_50 : f32 to vector<8x96xf32>
    %300 = arith.addf %299, %298 : vector<8x96xf32>
    %301 = arith.divf %299, %300 : vector<8x96xf32>
    %302 = vector.extract_strided_slice %301 {offsets = [0, 0], sizes = [8, 32], strides = [1, 1]} : vector<8x96xf32> to vector<8x32xf32>
    %303 = vector.extract_strided_slice %301 {offsets = [0, 32], sizes = [8, 32], strides = [1, 1]} : vector<8x96xf32> to vector<8x32xf32>
    %304 = vector.extract_strided_slice %301 {offsets = [0, 64], sizes = [8, 32], strides = [1, 1]} : vector<8x96xf32> to vector<8x32xf32>
    %305 = vector.extract_strided_slice %295 {offsets = [0, 96], sizes = [8, 32], strides = [1, 1]} : vector<8x128xf32> to vector<8x32xf32>
    %306 = math.tanh %305 : vector<8x32xf32>
    %307 = arith.mulf %303, %268 : vector<8x32xf32>
    %308 = arith.mulf %302, %306 : vector<8x32xf32>
    %309 = arith.addf %307, %308 : vector<8x32xf32>
    %310 = math.tanh %309 : vector<8x32xf32>
    %311 = arith.mulf %304, %310 : vector<8x32xf32>
    %312 = tpu.concatenate %311, %290 in 1 : vector<8x32xf32>, vector<8x32xf32> -> vector<8x64xf32>
    %cst_51 = arith.constant dense<0.000000e+00> : vector<8x128xf32>
    %313 = tpu.matmul %312, %1, %cst_51 {dimension_numbers = #tpu.dot_dimension_numbers<[1], [0], [0], [1], [0, 0, 1, 1], [], []>} : vector<8x64xf32>, vector<64x128xf32>, vector<8x128xf32> -> vector<8x128xf32>
    %314 = vector.broadcast %2 : vector<1x128xf32> to vector<8x128xf32>
    %315 = arith.addf %313, %314 : vector<8x128xf32>
    %316 = vector.extract_strided_slice %315 {offsets = [0, 0], sizes = [8, 96], strides = [1, 1]} : vector<8x128xf32> to vector<8x96xf32>
    %317 = arith.negf %316 : vector<8x96xf32>
    %318 = math.exp %317 : vector<8x96xf32>
    %cst_52 = arith.constant 1.000000e+00 : f32
    %319 = vector.broadcast %cst_52 : f32 to vector<8x96xf32>
    %320 = arith.addf %319, %318 : vector<8x96xf32>
    %321 = arith.divf %319, %320 : vector<8x96xf32>
    %322 = vector.extract_strided_slice %321 {offsets = [0, 0], sizes = [8, 32], strides = [1, 1]} : vector<8x96xf32> to vector<8x32xf32>
    %323 = vector.extract_strided_slice %321 {offsets = [0, 32], sizes = [8, 32], strides = [1, 1]} : vector<8x96xf32> to vector<8x32xf32>
    %324 = vector.extract_strided_slice %321 {offsets = [0, 64], sizes = [8, 32], strides = [1, 1]} : vector<8x96xf32> to vector<8x32xf32>
    %325 = vector.extract_strided_slice %315 {offsets = [0, 96], sizes = [8, 32], strides = [1, 1]} : vector<8x128xf32> to vector<8x32xf32>
    %326 = math.tanh %325 : vector<8x32xf32>
    %327 = arith.mulf %323, %288 : vector<8x32xf32>
    %328 = arith.mulf %322, %326 : vector<8x32xf32>
    %329 = arith.addf %327, %328 : vector<8x32xf32>
    %330 = math.tanh %329 : vector<8x32xf32>
    %331 = arith.mulf %324, %330 : vector<8x32xf32>
    %c8_i32 = arith.constant 8 : i32
    %c0_53 = arith.constant 0 : index
    %c0_54 = arith.constant 0 : index
    %332 = vector.load %arg4[%c0_53, %c0_54] : memref<1x32xf32, #tpu.memory_space<vmem>>, vector<1x32xf32>
    %333 = vector.broadcast %332 : vector<1x32xf32> to vector<8x32xf32>
    %334 = arith.mulf %331, %333 : vector<8x32xf32>
    %cst_55 = arith.constant dense<0.000000e+00> : vector<8xf32>
    %335 = vector.multi_reduction <add>, %334, %cst_55 [1] : vector<8x32xf32> to vector<8xf32>
    %336 = vector.shape_cast %335 : vector<8xf32> to vector<8x1xf32>
    %c0_56 = arith.constant 0 : index
    %c0_57 = arith.constant 0 : index
    %337 = vector.load %arg5[%c0_56, %c0_57] : memref<1x1xf32, #tpu.memory_space<vmem>>, vector<1x1xf32>
    %338 = vector.broadcast %337 : vector<1x1xf32> to vector<8x1xf32>
    %339 = arith.addf %336, %338 : vector<8x1xf32>
    %c0_58 = arith.constant 0 : index
    %c0_59 = arith.constant 0 : index
    %340 = vector.load %arg6[%c0_58, %c0_59] : memref<8x1xf32, #tpu.memory_space<vmem>>, vector<8x1xf32>
    tpu.vector_store %arg6[%c0_58, %c0_59], %339 {strides = array<i32>} : memref<8x1xf32, #tpu.memory_space<vmem>>, vector<8x1xf32>,
    return
  }
}

</mosaic_0001>

<llo_original>
// kernel: tpu_custom_call.1
$region0: #{tpu_custom_call.1}
  #allocation0 [shape = 'u32[]', space=smem, size = 0x4, offset = 0x4, fixed_abs, tag = 'smem constant byte address 0x4 - core index']
  #allocation1 [shape = 'u32[144,128]{1,0:T(1,128)}', space=vmem, size = 0x12000, scoped, tag = 'internal scratch']
  #allocation2 [shape = 'f32[1,1]{1,0:T(1,128)S(1)}', space=vmem, size = 0x200, scoped, tag = 'scoped memory for tpu_custom_call.1']
  %s0 = inlined_call_operand.hbm [shape: f32[8,8,128], index: 0, kind: input, shape index: {}]
  %s1 = inlined_call_operand.hbm [shape: f32[32,128], index: 1, kind: input, shape index: {}]
  %s2 = inlined_call_operand.hbm [shape: f32[64,128], index: 2, kind: input, shape index: {}]
  %s3 = inlined_call_operand.vmem [shape: f32[1,128], index: 3, kind: input, shape index: {}]
  %s4 = inlined_call_operand.vmem [shape: f32[1,32], index: 4, kind: input, shape index: {}]
  %s5 = inlined_call_operand.<no memory space> [shape: f32[1,1], index: 5, kind: input, shape index: {}]
  %s6 = inlined_call_operand.vmem [shape: f32[8,1], index: 6, kind: output, shape index: {}]
  %s7 = sld [smem:[#allocation0]]
  $region46: #{tpu_custom_call.1} parent=0
    _
  %s9 = ssub.s32 1, %s7
  %s10 = scalar_select 0, %s9, %s7
  %v11 = vstv %s5
  %12 = vst [vmem:[#allocation2] sm:$0x1] %v11
  $region1: #{tpu_custom_call.1} parent=0
    #allocation3 [shape = 'u8[32768]{0}', space=vmem, size = 0x8000, scoped, tag = 'input window, operand 0, single buffered']
    #allocation4 [shape = 's32[1]{0}', space=sflag, size = 0x4, scoped, tag = 'scoped memory for tpu_custom_call.1']
    #allocation5 [shape = 'u8[16384]{0}', space=vmem, size = 0x4000, scoped, tag = 'input window, operand 1, single buffered']
    #allocation6 [shape = 's32[1]{0}', space=sflag, size = 0x4, scoped, tag = 'scoped memory for tpu_custom_call.1']
    #allocation7 [shape = 'u8[32768]{0}', space=vmem, size = 0x8000, scoped, tag = 'input window, operand 2, single buffered']
    %13 = vsyncpa [#allocation4], 0
    %14 = vsyncpa [#allocation6], 0
    // Predicated region
    $region2: #{tpu_custom_call.1} parent=1 // pred_check
      _
    $region3: #{tpu_custom_call.1} parent=1 // pred_check_branch
      %16 = sbr.rel (0) target = $region5
    $region4: #{tpu_custom_call.1} parent=1 // pred_region
      %s18 = ssub.s32 1024, 1024
      %19 = vsyncadd [#allocation4], %s18
      %s20 = sshll.u32 [#allocation3], 4
      %s21 = int_to_ptr.vmem [resolvable:$true] %s20
      %26 = dma.hbm_to_vmem [thread:$0]  %s0, 1024, %s21, [#allocation4], 128, 128, 8
    $region5: #{tpu_custom_call.1} parent=1 // pred_fallthru
      _
    // Predicated region
    $region6: #{tpu_custom_call.1} parent=1 // pred_check
      _
    $region7: #{tpu_custom_call.1} parent=1 // pred_check_branch
      %28 = sbr.rel (0) target = $region9
    $region8: #{tpu_custom_call.1} parent=1 // pred_region
      %s30 = ssub.s32 512, 512
      %31 = vsyncadd [#allocation6], %s30
      %s32 = sshll.u32 [#allocation5], 4
      %s33 = int_to_ptr.vmem [resolvable:$true] %s32
      %38 = dma.hbm_to_vmem [thread:$0]  %s1, 512, %s33, [#allocation6], 128, 128, 8
    $region9: #{tpu_custom_call.1} parent=1 // pred_fallthru
      _
    // Predicated region
    $region10: #{tpu_custom_call.1} parent=1 // pred_check
      _
    $region11: #{tpu_custom_call.1} parent=1 // pred_check_branch
      %40 = sbr.rel (0) target = $region13
    $region12: #{tpu_custom_call.1} parent=1 // pred_region
      %s42 = ssub.s32 1024, 1024
      %43 = vsyncadd [#allocation6], %s42
      %s44 = sshll.u32 [#allocation7], 4
      %s45 = int_to_ptr.vmem [resolvable:$true] %s44
      %50 = dma.hbm_to_vmem [thread:$0]  %s2, 1024, %s45, [#allocation6], 128, 128, 8
    $region13: #{tpu_custom_call.1} parent=1 // pred_fallthru
      _
    // Predicated region
    $region14: #{tpu_custom_call.1} parent=1 // pred_check
      _
    $region15: #{tpu_custom_call.1} parent=1 // pred_check_branch
      %52 = sbr.rel (0) target = $region17
    $region16: #{tpu_custom_call.1} parent=1 // pred_region
      _
    $region17: #{tpu_custom_call.1} parent=1 // pred_fallthru
      _
    // Predicated region
    $region18: #{tpu_custom_call.1} parent=1 // pred_check
      _
    $region19: #{tpu_custom_call.1} parent=1 // pred_check_branch
      %54 = sbr.rel (0) target = $region21
    $region20: #{tpu_custom_call.1} parent=1 // pred_region
      _
    $region21: #{tpu_custom_call.1} parent=1 // pred_fallthru
      _
    // Predicated region
    $region22: #{tpu_custom_call.1} parent=1 // pred_check
      _
    $region23: #{tpu_custom_call.1} parent=1 // pred_check_branch
      %56 = sbr.rel (0) target = $region25
    $region24: #{tpu_custom_call.1} parent=1 // pred_region
      _
    $region25: #{tpu_custom_call.1} parent=1 // pred_fallthru
      _
    // Predicated region
    $region26: #{tpu_custom_call.1} parent=1 // pred_check
      _
    $region27: #{tpu_custom_call.1} parent=1 // pred_check_branch
      %58 = sbr.rel (0) target = $region29
    $region28: #{tpu_custom_call.1} parent=1 // pred_region
      %59 = dma.done [#allocation4], 1024
    $region29: #{tpu_custom_call.1} parent=1 // pred_fallthru
      _
    // Predicated region
    $region30: #{tpu_custom_call.1} parent=1 // pred_check
      _
    $region31: #{tpu_custom_call.1} parent=1 // pred_check_branch
      %61 = sbr.rel (0) target = $region33
    $region32: #{tpu_custom_call.1} parent=1 // pred_region
      %62 = dma.done [#allocation6], 512
    $region33: #{tpu_custom_call.1} parent=1 // pred_fallthru
      _
    // Predicated region
    $region34: #{tpu_custom_call.1} parent=1 // pred_check
      _
    $region35: #{tpu_custom_call.1} parent=1 // pred_check_branch
      %64 = sbr.rel (0) target = $region37
    $region36: #{tpu_custom_call.1} parent=1 // pred_region
      %65 = dma.done [#allocation6], 1024
    $region37: #{tpu_custom_call.1} parent=1 // pred_fallthru
      _
    %v66 = vld [vmem:[#allocation5] sm:$0xff]
    %v67 = vld [vmem:[#allocation5 + $0x8] sm:$0xff]
    %v68 = vld [vmem:[#allocation5 + $0x10] sm:$0xff]
    %v69 = vld [vmem:[#allocation5 + $0x18] sm:$0xff]
    %v70 = vld [vmem:[#allocation7] sm:$0xff]
    %v71 = vld [vmem:[#allocation7 + $0x8] sm:$0xff]
    %v72 = vld [vmem:[#allocation7 + $0x10] sm:$0xff]
    %v73 = vld [vmem:[#allocation7 + $0x18] sm:$0xff]
    %v74 = vld [vmem:[#allocation7 + $0x20] sm:$0xff]
    %v75 = vld [vmem:[#allocation7 + $0x28] sm:$0xff]
    %v76 = vld [vmem:[#allocation7 + $0x30] sm:$0xff]
    %v77 = vld [vmem:[#allocation7 + $0x38] sm:$0xff]
    %v78 = vld [vmem:[%s3] sm:$0x1]
    %v79 = vld [vmem:[#allocation3] sm:$0xff]
    %vm80 = vcmask 261120
    %v82 = vsel %vm80, 0.0, 0
    %84 = vmatprep.subr.mxu0 0.0
    %85 = vmatpush1.msra.mxu0 %v66
    %86 = vmatprep.subr.mxu0 0.0
    %87 = vmatpush1.msra.mxu0 %v67
    %88 = vmatprep.subr.mxu0 0.0
    %89 = vmatpush1.msra.mxu0 %v68
    %90 = vmatprep.subr.mxu0 0.0
    %91 = vmatpush1.msra.mxu0 %v69
    %92 = vmatprep.subr.mxu0 0.0
    %93 = vmatpush1.msra.mxu0 0.0
    %94 = vmatprep.subr.mxu0 0.0
    %95 = vmatpush1.msra.mxu0 0.0
    %96 = vmatprep.subr.mxu0 0.0
    %97 = vmatpush1.msra.mxu0 0.0
    %98 = vmatprep.subr.mxu0 0.0
    %99 = vmatpush1.msra.mxu0 0.0
    %100 = vmatprep.subr.mxu0 0.0
    %101 = vmatpush1.msra.mxu0 0.0
    %102 = vmatprep.subr.mxu0 0.0
    %103 = vmatpush1.msra.mxu0 0.0
    %104 = vmatprep.subr.mxu0 0.0
    %105 = vmatpush1.msra.mxu0 0.0
    %106 = vmatprep.subr.mxu0 0.0
    %107 = vmatpush1.msra.mxu0 0.0
    %108 = vmatprep.subr.mxu0 0.0
    %109 = vmatpush1.msra.mxu0 0.0
    %110 = vmatprep.subr.mxu0 0.0
    %111 = vmatpush1.msra.mxu0 0.0
    %112 = vmatprep.subr.mxu0 0.0
    %113 = vmatpush1.msra.mxu0 0.0
    %114 = vmatprep.subr.mxu0 0.0
    %115 = vmatpush1.msra.mxu0 0.0
    %116 = vmatprep.subr.mxu0 0.0
    %117 = vmatpush1.msra.mxu0 0.0
    %118 = vmatprep.subr.mxu0 0.0
    %119 = vmatpush1.msra.mxu0 0.0
    %120 = vmatprep.subr.mxu0 0.0
    %121 = vmatpush1.msra.mxu0 0.0
    %122 = vmatprep.subr.mxu0 0.0
    %123 = vmatpush1.msra.mxu0 0.0
    %124 = vmatprep.subr.mxu0 0.0
    %125 = vmatpush1.msra.mxu0 0.0
    %126 = vmatprep.subr.mxu0 0.0
    %127 = vmatpush1.msra.mxu0 0.0
    %128 = vmatprep.subr.mxu0 0.0
    %129 = vmatpush1.msra.mxu0 0.0
    %130 = vmatprep.subr.mxu0 0.0
    %131 = vmatpush1.msra.mxu0 0.0
    %132 = vmatprep.subr.mxu0 0.0
    %133 = vmatpush1.msra.mxu0 0.0
    %134 = vmatprep.subr.mxu0 0.0
    %135 = vmatpush1.msra.mxu0 0.0
    %136 = vmatprep.subr.mxu0 0.0
    %137 = vmatpush1.msra.mxu0 0.0
    %138 = vmatprep.subr.mxu0 0.0
    %139 = vmatpush1.msra.mxu0 0.0
    %140 = vmatprep.subr.mxu0 0.0
    %141 = vmatpush1.msra.mxu0 0.0
    %142 = vmatprep.subr.mxu0 0.0
    %143 = vmatpush1.msra.mxu0 0.0
    %144 = vmatprep.subr.mxu0 0.0
    %145 = vmatpush1.msra.mxu0 0.0
    %146 = vmatprep.subr.mxu0 0.0
    %147 = vmatpush1.msra.mxu0 0.0
    %148 = vmatprep.mubr.f32.mxu0 0.0
    %149 = vmatmul.mubr.f32.gmra.mrb[0].mxu0 %v82
    %v150 = vpop.f32.mrb[0].mxu0
    %v151 = vadd.f32 0.0, %v150
    %v152 = vpop.f32.mrb[0].mxu0
    %153 = vdwg.mxu0
    %v154 = vadd.f32 %v79, %v151
    %v155 = vxor.u32 %v154, 2147483648
    %v156 = vmul.f32 %v155, 1.442695
    %v157 = vpow.pop %v156
    %v158 = vadd.f32 %v157, 1.0
    %v159 = vrcp.pop %v158
    %v160 = vmul.f32 1.0, %v159
    %v161 = vtanh.pop %v154
    %v162 = vmul.f32 %v160, 0.0
    %164 = vrot.lane.b32.xlu0 %v161, 32
    %v165 = vpop.permute.xlu0 %164
    %v167 = vmul.f32 %v160, %v165
    %169 = vrot.lane.b32.xlu0 %v167, 32
    %v170 = vpop.permute.xlu0 %169
    %v172 = vadd.f32 %v162, %v170
    %v173 = vtanh.pop %v172
    %175 = vrot.lane.b32.xlu0 %v173, 32
    %v176 = vpop.permute.xlu0 %175
    %v178 = vmul.f32 %v160, %v176
    %180 = vrot.lane.b32.xlu0 %v178, 64
    %v181 = vpop.permute.xlu0 %180
    %v183 = vsel %vm80, %v181, 0.0
    %v185 = vlaneseq
    %v186 = vshrl.u32 %v185, 7
    %v187 = vsub.s32 0, %v186
    %v188 = vrot.slane %v78, %v187
    %vm190 = vcmask 523264
    %v192 = vsel %vm190, %v183, 0
    %194 = vmatprep.subr.mxu0 0.0
    %195 = vmatpush1.msra.mxu0 %v70
    %196 = vmatprep.subr.mxu0 0.0
    %197 = vmatpush1.msra.mxu0 %v71
    %198 = vmatprep.subr.mxu0 0.0
    %199 = vmatpush1.msra.mxu0 %v72
    %200 = vmatprep.subr.mxu0 0.0
    %201 = vmatpush1.msra.mxu0 %v73
    %202 = vmatprep.subr.mxu0 0.0
    %203 = vmatpush1.msra.mxu0 %v74
    %204 = vmatprep.subr.mxu0 0.0
    %205 = vmatpush1.msra.mxu0 %v75
    %206 = vmatprep.subr.mxu0 0.0
    %207 = vmatpush1.msra.mxu0 %v76
    %208 = vmatprep.subr.mxu0 0.0
    %209 = vmatpush1.msra.mxu0 %v77
    %210 = vmatprep.subr.mxu0 0.0
    %211 = vmatpush1.msra.mxu0 0.0
    %212 = vmatprep.subr.mxu0 0.0
    %213 = vmatpush1.msra.mxu0 0.0
    %214 = vmatprep.subr.mxu0 0.0
    %215 = vmatpush1.msra.mxu0 0.0
    %216 = vmatprep.subr.mxu0 0.0
    %217 = vmatpush1.msra.mxu0 0.0
    %218 = vmatprep.subr.mxu0 0.0
    %219 = vmatpush1.msra.mxu0 0.0
    %220 = vmatprep.subr.mxu0 0.0
    %221 = vmatpush1.msra.mxu0 0.0
    %222 = vmatprep.subr.mxu0 0.0
    %223 = vmatpush1.msra.mxu0 0.0
    %224 = vmatprep.subr.mxu0 0.0
    %225 = vmatpush1.msra.mxu0 0.0
    %226 = vmatprep.subr.mxu0 0.0
    %227 = vmatpush1.msra.mxu0 0.0
    %228 = vmatprep.subr.mxu0 0.0
    %229 = vmatpush1.msra.mxu0 0.0
    %230 = vmatprep.subr.mxu0 0.0
    %231 = vmatpush1.msra.mxu0 0.0
    %232 = vmatprep.subr.mxu0 0.0
    %233 = vmatpush1.msra.mxu0 0.0
    %234 = vmatprep.subr.mxu0 0.0
    %235 = vmatpush1.msra.mxu0 0.0
    %236 = vmatprep.subr.mxu0 0.0
    %237 = vmatpush1.msra.mxu0 0.0
    %238 = vmatprep.subr.mxu0 0.0
    %239 = vmatpush1.msra.mxu0 0.0
    %240 = vmatprep.subr.mxu0 0.0
    %241 = vmatpush1.msra.mxu0 0.0
    %242 = vmatprep.subr.mxu0 0.0
    %243 = vmatpush1.msra.mxu0 0.0
    %244 = vmatprep.subr.mxu0 0.0
    %245 = vmatpush1.msra.mxu0 0.0
    %246 = vmatprep.subr.mxu0 0.0
    %247 = vmatpush1.msra.mxu0 0.0
    %248 = vmatprep.subr.mxu0 0.0
    %249 = vmatpush1.msra.mxu0 0.0
    %250 = vmatprep.subr.mxu0 0.0
    %251 = vmatpush1.msra.mxu0 0.0
    %252 = vmatprep.subr.mxu0 0.0
    %253 = vmatpush1.msra.mxu0 0.0
    %254 = vmatprep.subr.mxu0 0.0
    %255 = vmatpush1.msra.mxu0 0.0
    %256 = vmatprep.subr.mxu0 0.0
    %257 = vmatpush1.msra.mxu0 0.0
    %258 = vmatprep.mubr.f32.mxu0 0.0
    %259 = vmatmul.mubr.f32.gmra.mrb[0].mxu0 %v192
    %v260 = vpop.f32.mrb[0].mxu0
    %v261 = vadd.f32 %v188, %v260
    %v262 = vpop.f32.mrb[0].mxu0
    %263 = vdwg.mxu0
    %v264 = vxor.u32 %v261, 2147483648
    %v265 = vmul.f32 %v264, 1.442695
    %v266 = vpow.pop %v265
    %v267 = vadd.f32 %v266, 1.0
    %v268 = vrcp.pop %v267
    %v269 = vmul.f32 1.0, %v268
    %v270 = vtanh.pop %v261
    %v271 = vmul.f32 %v269, 0.0
    %273 = vrot.lane.b32.xlu0 %v270, 32
    %v274 = vpop.permute.xlu0 %273
    %v276 = vmul.f32 %v269, %v274
    %278 = vrot.lane.b32.xlu0 %v276, 32
    %v279 = vpop.permute.xlu0 %278
    %v281 = vadd.f32 %v271, %v279
    %v282 = vtanh.pop %v281
    %284 = vrot.lane.b32.xlu0 %v282, 32
    %v285 = vpop.permute.xlu0 %284
    %v287 = vmul.f32 %v269, %v285
    %s288 = scalar_lea.vmem [#allocation3], 8
    %v289 = vld [vmem:[%s288] sm:$0xff]
    %v290 = vsel %vm80, %v181, 0
    %292 = vmatprep.subr.mxu0 0.0
    %293 = vmatpush1.msra.mxu0 %v66
    %294 = vmatprep.subr.mxu0 0.0
    %295 = vmatpush1.msra.mxu0 %v67
    %296 = vmatprep.subr.mxu0 0.0
    %297 = vmatpush1.msra.mxu0 %v68
    %298 = vmatprep.subr.mxu0 0.0
    %299 = vmatpush1.msra.mxu0 %v69
    %300 = vmatprep.subr.mxu0 0.0
    %301 = vmatpush1.msra.mxu0 0.0
    %302 = vmatprep.subr.mxu0 0.0
    %303 = vmatpush1.msra.mxu0 0.0
    %304 = vmatprep.subr.mxu0 0.0
    %305 = vmatpush1.msra.mxu0 0.0
    %306 = vmatprep.subr.mxu0 0.0
    %307 = vmatpush1.msra.mxu0 0.0
    %308 = vmatprep.subr.mxu0 0.0
    %309 = vmatpush1.msra.mxu0 0.0
    %310 = vmatprep.subr.mxu0 0.0
    %311 = vmatpush1.msra.mxu0 0.0
    %312 = vmatprep.subr.mxu0 0.0
    %313 = vmatpush1.msra.mxu0 0.0
    %314 = vmatprep.subr.mxu0 0.0
    %315 = vmatpush1.msra.mxu0 0.0
    %316 = vmatprep.subr.mxu0 0.0
    %317 = vmatpush1.msra.mxu0 0.0
    %318 = vmatprep.subr.mxu0 0.0
    %319 = vmatpush1.msra.mxu0 0.0
    %320 = vmatprep.subr.mxu0 0.0
    %321 = vmatpush1.msra.mxu0 0.0
    %322 = vmatprep.subr.mxu0 0.0
    %323 = vmatpush1.msra.mxu0 0.0
    %324 = vmatprep.subr.mxu0 0.0
    %325 = vmatpush1.msra.mxu0 0.0
    %326 = vmatprep.subr.mxu0 0.0
    %327 = vmatpush1.msra.mxu0 0.0
    %328 = vmatprep.subr.mxu0 0.0
    %329 = vmatpush1.msra.mxu0 0.0
    %330 = vmatprep.subr.mxu0 0.0
    %331 = vmatpush1.msra.mxu0 0.0
    %332 = vmatprep.subr.mxu0 0.0
    %333 = vmatpush1.msra.mxu0 0.0
    %334 = vmatprep.subr.mxu0 0.0
    %335 = vmatpush1.msra.mxu0 0.0
    %336 = vmatprep.subr.mxu0 0.0
    %337 = vmatpush1.msra.mxu0 0.0
    %338 = vmatprep.subr.mxu0 0.0
    %339 = vmatpush1.msra.mxu0 0.0
    %340 = vmatprep.subr.mxu0 0.0
    %341 = vmatpush1.msra.mxu0 0.0
    %342 = vmatprep.subr.mxu0 0.0
    %343 = vmatpush1.msra.mxu0 0.0
    %344 = vmatprep.subr.mxu0 0.0
    %345 = vmatpush1.msra.mxu0 0.0
    %346 = vmatprep.subr.mxu0 0.0
    %347 = vmatpush1.msra.mxu0 0.0
    %348 = vmatprep.subr.mxu0 0.0
    %349 = vmatpush1.msra.mxu0 0.0
    %350 = vmatprep.subr.mxu0 0.0
    %351 = vmatpush1.msra.mxu0 0.0
    %352 = vmatprep.subr.mxu0 0.0
    %353 = vmatpush1.msra.mxu0 0.0
    %354 = vmatprep.subr.mxu0 0.0
    %355 = vmatpush1.msra.mxu0 0.0
    %356 = vmatprep.mubr.f32.mxu0 0.0
    %357 = vmatmul.mubr.f32.gmra.mrb[0].mxu0 %v290
    %v358 = vpop.f32.mrb[0].mxu0
    %v359 = vadd.f32 0.0, %v358
    %v360 = vpop.f32.mrb[0].mxu0
    %361 = vdwg.mxu0
    %v362 = vadd.f32 %v289, %v359
    %v363 = vxor.u32 %v362, 2147483648
    %v364 = vmul.f32 %v363, 1.442695
    %v365 = vpow.pop %v364
    %v366 = vadd.f32 %v365, 1.0
    %v367 = vrcp.pop %v366
    %v368 = vmul.f32 1.0, %v367
    %v369 = vtanh.pop %v362
    %v370 = vmul.f32 %v368, %v172
    %372 = vrot.lane.b32.xlu0 %v369, 32
    %v373 = vpop.permute.xlu0 %372
    %v375 = vmul.f32 %v368, %v373
    %377 = vrot.lane.b32.xlu0 %v375, 32
    %v378 = vpop.permute.xlu0 %377
    %v380 = vadd.f32 %v370, %v378
    %v381 = vtanh.pop %v380
    %383 = vrot.lane.b32.xlu0 %v381, 32
    %v384 = vpop.permute.xlu0 %383
    %v386 = vmul.f32 %v368, %v384
    %388 = vrot.lane.b32.xlu0 %v386, 64
    %v389 = vpop.permute.xlu0 %388
    %392 = vrot.lane.b32.xlu0 %v287, 96
    %v393 = vpop.permute.xlu0 %392
    %v395 = vsel %vm80, %v389, %v393
    %v397 = vsel %vm190, %v395, 0
    %399 = vmatprep.subr.mxu0 0.0
    %400 = vmatpush1.msra.mxu0 %v70
    %401 = vmatprep.subr.mxu0 0.0
    %402 = vmatpush1.msra.mxu0 %v71
    %403 = vmatprep.subr.mxu0 0.0
    %404 = vmatpush1.msra.mxu0 %v72
    %405 = vmatprep.subr.mxu0 0.0
    %406 = vmatpush1.msra.mxu0 %v73
    %407 = vmatprep.subr.mxu0 0.0
    %408 = vmatpush1.msra.mxu0 %v74
    %409 = vmatprep.subr.mxu0 0.0
    %410 = vmatpush1.msra.mxu0 %v75
    %411 = vmatprep.subr.mxu0 0.0
    %412 = vmatpush1.msra.mxu0 %v76
    %413 = vmatprep.subr.mxu0 0.0
    %414 = vmatpush1.msra.mxu0 %v77
    %415 = vmatprep.subr.mxu0 0.0
    %416 = vmatpush1.msra.mxu0 0.0
    %417 = vmatprep.subr.mxu0 0.0
    %418 = vmatpush1.msra.mxu0 0.0
    %419 = vmatprep.subr.mxu0 0.0
    %420 = vmatpush1.msra.mxu0 0.0
    %421 = vmatprep.subr.mxu0 0.0
    %422 = vmatpush1.msra.mxu0 0.0
    %423 = vmatprep.subr.mxu0 0.0
    %424 = vmatpush1.msra.mxu0 0.0
    %425 = vmatprep.subr.mxu0 0.0
    %426 = vmatpush1.msra.mxu0 0.0
    %427 = vmatprep.subr.mxu0 0.0
    %428 = vmatpush1.msra.mxu0 0.0
    %429 = vmatprep.subr.mxu0 0.0
    %430 = vmatpush1.msra.mxu0 0.0
    %431 = vmatprep.subr.mxu0 0.0
    %432 = vmatpush1.msra.mxu0 0.0
    %433 = vmatprep.subr.mxu0 0.0
    %434 = vmatpush1.msra.mxu0 0.0
    %435 = vmatprep.subr.mxu0 0.0
    %436 = vmatpush1.msra.mxu0 0.0
    %437 = vmatprep.subr.mxu0 0.0
    %438 = vmatpush1.msra.mxu0 0.0
    %439 = vmatprep.subr.mxu0 0.0
    %440 = vmatpush1.msra.mxu0 0.0
    %441 = vmatprep.subr.mxu0 0.0
    %442 = vmatpush1.msra.mxu0 0.0
    %443 = vmatprep.subr.mxu0 0.0
    %444 = vmatpush1.msra.mxu0 0.0
    %445 = vmatprep.subr.mxu0 0.0
    %446 = vmatpush1.msra.mxu0 0.0
    %447 = vmatprep.subr.mxu0 0.0
    %448 = vmatpush1.msra.mxu0 0.0
    %449 = vmatprep.subr.mxu0 0.0
    %450 = vmatpush1.msra.mxu0 0.0
    %451 = vmatprep.subr.mxu0 0.0
    %452 = vmatpush1.msra.mxu0 0.0
    %453 = vmatprep.subr.mxu0 0.0
    %454 = vmatpush1.msra.mxu0 0.0
    %455 = vmatprep.subr.mxu0 0.0
    %456 = vmatpush1.msra.mxu0 0.0
    %457 = vmatprep.subr.mxu0 0.0
    %458 = vmatpush1.msra.mxu0 0.0
    %459 = vmatprep.subr.mxu0 0.0
    %460 = vmatpush1.msra.mxu0 0.0
    %461 = vmatprep.subr.mxu0 0.0
    %462 = vmatpush1.msra.mxu0 0.0
    %463 = vmatprep.mubr.f32.mxu0 0.0
    %464 = vmatmul.mubr.f32.gmra.mrb[0].mxu0 %v397
    %v465 = vpop.f32.mrb[0].mxu0
    %v466 = vadd.f32 %v188, %v465
    %v467 = vpop.f32.mrb[0].mxu0
    %468 = vdwg.mxu0
    %v469 = vxor.u32 %v466, 2147483648
    %v470 = vmul.f32 %v469, 1.442695
    %v471 = vpow.pop %v470
    %v472 = vadd.f32 %v471, 1.0
    %v473 = vrcp.pop %v472
    %v474 = vmul.f32 1.0, %v473
    %v475 = vtanh.pop %v466
    %v476 = vmul.f32 %v474, %v281
    %478 = vrot.lane.b32.xlu0 %v475, 32
    %v479 = vpop.permute.xlu0 %478
    %v481 = vmul.f32 %v474, %v479
    %483 = vrot.lane.b32.xlu0 %v481, 32
    %v484 = vpop.permute.xlu0 %483
    %v486 = vadd.f32 %v476, %v484
    %v487 = vtanh.pop %v486
    %489 = vrot.lane.b32.xlu0 %v487, 32
    %v490 = vpop.permute.xlu0 %489
    %v492 = vmul.f32 %v474, %v490
    %s493 = scalar_lea.vmem [#allocation3], 16
    %v494 = vld [vmem:[%s493] sm:$0xff]
    %v495 = vsel %vm80, %v389, 0
    %497 = vmatprep.subr.mxu0 0.0
    %498 = vmatpush1.msra.mxu0 %v66
    %499 = vmatprep.subr.mxu0 0.0
    %500 = vmatpush1.msra.mxu0 %v67
    %501 = vmatprep.subr.mxu0 0.0
    %502 = vmatpush1.msra.mxu0 %v68
    %503 = vmatprep.subr.mxu0 0.0
    %504 = vmatpush1.msra.mxu0 %v69
    %505 = vmatprep.subr.mxu0 0.0
    %506 = vmatpush1.msra.mxu0 0.0
    %507 = vmatprep.subr.mxu0 0.0
    %508 = vmatpush1.msra.mxu0 0.0
    %509 = vmatprep.subr.mxu0 0.0
    %510 = vmatpush1.msra.mxu0 0.0
    %511 = vmatprep.subr.mxu0 0.0
    %512 = vmatpush1.msra.mxu0 0.0
    %513 = vmatprep.subr.mxu0 0.0
    %514 = vmatpush1.msra.mxu0 0.0
    %515 = vmatprep.subr.mxu0 0.0
    %516 = vmatpush1.msra.mxu0 0.0
    %517 = vmatprep.subr.mxu0 0.0
    %518 = vmatpush1.msra.mxu0 0.0
    %519 = vmatprep.subr.mxu0 0.0
    %520 = vmatpush1.msra.mxu0 0.0
    %521 = vmatprep.subr.mxu0 0.0
    %522 = vmatpush1.msra.mxu0 0.0
    %523 = vmatprep.subr.mxu0 0.0
    %524 = vmatpush1.msra.mxu0 0.0
    %525 = vmatprep.subr.mxu0 0.0
    %526 = vmatpush1.msra.mxu0 0.0
    %527 = vmatprep.subr.mxu0 0.0
    %528 = vmatpush1.msra.mxu0 0.0
    %529 = vmatprep.subr.mxu0 0.0
    %530 = vmatpush1.msra.mxu0 0.0
    %531 = vmatprep.subr.mxu0 0.0
    %532 = vmatpush1.msra.mxu0 0.0
    %533 = vmatprep.subr.mxu0 0.0
    %534 = vmatpush1.msra.mxu0 0.0
    %535 = vmatprep.subr.mxu0 0.0
    %536 = vmatpush1.msra.mxu0 0.0
    %537 = vmatprep.subr.mxu0 0.0
    %538 = vmatpush1.msra.mxu0 0.0
    %539 = vmatprep.subr.mxu0 0.0
    %540 = vmatpush1.msra.mxu0 0.0
    %541 = vmatprep.subr.mxu0 0.0
    %542 = vmatpush1.msra.mxu0 0.0
    %543 = vmatprep.subr.mxu0 0.0
    %544 = vmatpush1.msra.mxu0 0.0
    %545 = vmatprep.subr.mxu0 0.0
    %546 = vmatpush1.msra.mxu0 0.0
    %547 = vmatprep.subr.mxu0 0.0
    %548 = vmatpush1.msra.mxu0 0.0
    %549 = vmatprep.subr.mxu0 0.0
    %550 = vmatpush1.msra.mxu0 0.0
    %551 = vmatprep.subr.mxu0 0.0
    %552 = vmatpush1.msra.mxu0 0.0
    %553 = vmatprep.subr.mxu0 0.0
    %554 = vmatpush1.msra.mxu0 0.0
    %555 = vmatprep.subr.mxu0 0.0
    %556 = vmatpush1.msra.mxu0 0.0
    %557 = vmatprep.subr.mxu0 0.0
    %558 = vmatpush1.msra.mxu0 0.0
    %559 = vmatprep.subr.mxu0 0.0
    %560 = vmatpush1.msra.mxu0 0.0
    %561 = vmatprep.mubr.f32.mxu0 0.0
    %562 = vmatmul.mubr.f32.gmra.mrb[0].mxu0 %v495
    %v563 = vpop.f32.mrb[0].mxu0
    %v564 = vadd.f32 0.0, %v563
    %v565 = vpop.f32.mrb[0].mxu0
    %566 = vdwg.mxu0
    %v567 = vadd.f32 %v494, %v564
    %v568 = vxor.u32 %v567, 2147483648
    %v569 = vmul.f32 %v568, 1.442695
    %v570 = vpow.pop %v569
    %v571 = vadd.f32 %v570, 1.0
    %v572 = vrcp.pop %v571
    %v573 = vmul.f32 1.0, %v572
    %v574 = vtanh.pop %v567
    %v575 = vmul.f32 %v573, %v380
    %577 = vrot.lane.b32.xlu0 %v574, 32
    %v578 = vpop.permute.xlu0 %577
    %v580 = vmul.f32 %v573, %v578
    %582 = vrot.lane.b32.xlu0 %v580, 32
    %v583 = vpop.permute.xlu0 %582
    %v585 = vadd.f32 %v575, %v583
    %v586 = vtanh.pop %v585
    %588 = vrot.lane.b32.xlu0 %v586, 32
    %v589 = vpop.permute.xlu0 %588
    %v591 = vmul.f32 %v573, %v589
    %593 = vrot.lane.b32.xlu0 %v591, 64
    %v594 = vpop.permute.xlu0 %593
    %597 = vrot.lane.b32.xlu0 %v492, 96
    %v598 = vpop.permute.xlu0 %597
    %v600 = vsel %vm80, %v594, %v598
    %v602 = vsel %vm190, %v600, 0
    %604 = vmatprep.subr.mxu0 0.0
    %605 = vmatpush1.msra.mxu0 %v70
    %606 = vmatprep.subr.mxu0 0.0
    %607 = vmatpush1.msra.mxu0 %v71
    %608 = vmatprep.subr.mxu0 0.0
    %609 = vmatpush1.msra.mxu0 %v72
    %610 = vmatprep.subr.mxu0 0.0
    %611 = vmatpush1.msra.mxu0 %v73
    %612 = vmatprep.subr.mxu0 0.0
    %613 = vmatpush1.msra.mxu0 %v74
    %614 = vmatprep.subr.mxu0 0.0
    %615 = vmatpush1.msra.mxu0 %v75
    %616 = vmatprep.subr.mxu0 0.0
    %617 = vmatpush1.msra.mxu0 %v76
    %618 = vmatprep.subr.mxu0 0.0
    %619 = vmatpush1.msra.mxu0 %v77
    %620 = vmatprep.subr.mxu0 0.0
    %621 = vmatpush1.msra.mxu0 0.0
    %622 = vmatprep.subr.mxu0 0.0
    %623 = vmatpush1.msra.mxu0 0.0
    %624 = vmatprep.subr.mxu0 0.0
    %625 = vmatpush1.msra.mxu0 0.0
    %626 = vmatprep.subr.mxu0 0.0
    %627 = vmatpush1.msra.mxu0 0.0
    %628 = vmatprep.subr.mxu0 0.0
    %629 = vmatpush1.msra.mxu0 0.0
    %630 = vmatprep.subr.mxu0 0.0
    %631 = vmatpush1.msra.mxu0 0.0
    %632 = vmatprep.subr.mxu0 0.0
    %633 = vmatpush1.msra.mxu0 0.0
    %634 = vmatprep.subr.mxu0 0.0
    %635 = vmatpush1.msra.mxu0 0.0
    %636 = vmatprep.subr.mxu0 0.0
    %637 = vmatpush1.msra.mxu0 0.0
    %638 = vmatprep.subr.mxu0 0.0
    %639 = vmatpush1.msra.mxu0 0.0
    %640 = vmatprep.subr.mxu0 0.0
    %641 = vmatpush1.msra.mxu0 0.0
    %642 = vmatprep.subr.mxu0 0.0
    %643 = vmatpush1.msra.mxu0 0.0
    %644 = vmatprep.subr.mxu0 0.0
    %645 = vmatpush1.msra.mxu0 0.0
    %646 = vmatprep.subr.mxu0 0.0
    %647 = vmatpush1.msra.mxu0 0.0
    %648 = vmatprep.subr.mxu0 0.0
    %649 = vmatpush1.msra.mxu0 0.0
    %650 = vmatprep.subr.mxu0 0.0
    %651 = vmatpush1.msra.mxu0 0.0
    %652 = vmatprep.subr.mxu0 0.0
    %653 = vmatpush1.msra.mxu0 0.0
    %654 = vmatprep.subr.mxu0 0.0
    %655 = vmatpush1.msra.mxu0 0.0
    %656 = vmatprep.subr.mxu0 0.0
    %657 = vmatpush1.msra.mxu0 0.0
    %658 = vmatprep.subr.mxu0 0.0
    %659 = vmatpush1.msra.mxu0 0.0
    %660 = vmatprep.subr.mxu0 0.0
    %661 = vmatpush1.msra.mxu0 0.0
    %662 = vmatprep.subr.mxu0 0.0
    %663 = vmatpush1.msra.mxu0 0.0
    %664 = vmatprep.subr.mxu0 0.0
    %665 = vmatpush1.msra.mxu0 0.0
    %666 = vmatprep.subr.mxu0 0.0
    %667 = vmatpush1.msra.mxu0 0.0
    %668 = vmatprep.mubr.f32.mxu0 0.0
    %669 = vmatmul.mubr.f32.gmra.mrb[0].mxu0 %v602
    %v670 = vpop.f32.mrb[0].mxu0
    %v671 = vadd.f32 %v188, %v670
    %v672 = vpop.f32.mrb[0].mxu0
    %673 = vdwg.mxu0
    %v674 = vxor.u32 %v671, 2147483648
    %v675 = vmul.f32 %v674, 1.442695
    %v676 = vpow.pop %v675
    %v677 = vadd.f32 %v676, 1.0
    %v678 = vrcp.pop %v677
    %v679 = vmul.f32 1.0, %v678
    %v680 = vtanh.pop %v671
    %v681 = vmul.f32 %v679, %v486
    %683 = vrot.lane.b32.xlu0 %v680, 32
    %v684 = vpop.permute.xlu0 %683
    %v686 = vmul.f32 %v679, %v684
    %688 = vrot.lane.b32.xlu0 %v686, 32
    %v689 = vpop.permute.xlu0 %688
    %v691 = vadd.f32 %v681, %v689
    %v692 = vtanh.pop %v691
    %694 = vrot.lane.b32.xlu0 %v692, 32
    %v695 = vpop.permute.xlu0 %694
    %v697 = vmul.f32 %v679, %v695
    %s698 = scalar_lea.vmem [#allocation3], 24
    %v699 = vld [vmem:[%s698] sm:$0xff]
    %v700 = vsel %vm80, %v594, 0
    %702 = vmatprep.subr.mxu0 0.0
    %703 = vmatpush1.msra.mxu0 %v66
    %704 = vmatprep.subr.mxu0 0.0
    %705 = vmatpush1.msra.mxu0 %v67
    %706 = vmatprep.subr.mxu0 0.0
    %707 = vmatpush1.msra.mxu0 %v68
    %708 = vmatprep.subr.mxu0 0.0
    %709 = vmatpush1.msra.mxu0 %v69
    %710 = vmatprep.subr.mxu0 0.0
    %711 = vmatpush1.msra.mxu0 0.0
    %712 = vmatprep.subr.mxu0 0.0
    %713 = vmatpush1.msra.mxu0 0.0
    %714 = vmatprep.subr.mxu0 0.0
    %715 = vmatpush1.msra.mxu0 0.0
    %716 = vmatprep.subr.mxu0 0.0
    %717 = vmatpush1.msra.mxu0 0.0
    %718 = vmatprep.subr.mxu0 0.0
    %719 = vmatpush1.msra.mxu0 0.0
    %720 = vmatprep.subr.mxu0 0.0
    %721 = vmatpush1.msra.mxu0 0.0
    %722 = vmatprep.subr.mxu0 0.0
    %723 = vmatpush1.msra.mxu0 0.0
    %724 = vmatprep.subr.mxu0 0.0
    %725 = vmatpush1.msra.mxu0 0.0
    %726 = vmatprep.subr.mxu0 0.0
    %727 = vmatpush1.msra.mxu0 0.0
    %728 = vmatprep.subr.mxu0 0.0
    %729 = vmatpush1.msra.mxu0 0.0
    %730 = vmatprep.subr.mxu0 0.0
    %731 = vmatpush1.msra.mxu0 0.0
    %732 = vmatprep.subr.mxu0 0.0
    %733 = vmatpush1.msra.mxu0 0.0
    %734 = vmatprep.subr.mxu0 0.0
    %735 = vmatpush1.msra.mxu0 0.0
    %736 = vmatprep.subr.mxu0 0.0
    %737 = vmatpush1.msra.mxu0 0.0
    %738 = vmatprep.subr.mxu0 0.0
    %739 = vmatpush1.msra.mxu0 0.0
    %740 = vmatprep.subr.mxu0 0.0
    %741 = vmatpush1.msra.mxu0 0.0
    %742 = vmatprep.subr.mxu0 0.0
    %743 = vmatpush1.msra.mxu0 0.0
    %744 = vmatprep.subr.mxu0 0.0
    %745 = vmatpush1.msra.mxu0 0.0
    %746 = vmatprep.subr.mxu0 0.0
    %747 = vmatpush1.msra.mxu0 0.0
    %748 = vmatprep.subr.mxu0 0.0
    %749 = vmatpush1.msra.mxu0 0.0
    %750 = vmatprep.subr.mxu0 0.0
    %751 = vmatpush1.msra.mxu0 0.0
    %752 = vmatprep.subr.mxu0 0.0
    %753 = vmatpush1.msra.mxu0 0.0
    %754 = vmatprep.subr.mxu0 0.0
    %755 = vmatpush1.msra.mxu0 0.0
    %756 = vmatprep.subr.mxu0 0.0
    %757 = vmatpush1.msra.mxu0 0.0
    %758 = vmatprep.subr.mxu0 0.0
    %759 = vmatpush1.msra.mxu0 0.0
    %760 = vmatprep.subr.mxu0 0.0
    %761 = vmatpush1.msra.mxu0 0.0
    %762 = vmatprep.subr.mxu0 0.0
    %763 = vmatpush1.msra.mxu0 0.0
    %764 = vmatprep.subr.mxu0 0.0
    %765 = vmatpush1.msra.mxu0 0.0
    %766 = vmatprep.mubr.f32.mxu0 0.0
    %767 = vmatmul.mubr.f32.gmra.mrb[0].mxu0 %v700
    %v768 = vpop.f32.mrb[0].mxu0
    %v769 = vadd.f32 0.0, %v768
    %v770 = vpop.f32.mrb[0].mxu0
    %771 = vdwg.mxu0
    %v772 = vadd.f32 %v699, %v769
    %v773 = vxor.u32 %v772, 2147483648
    %v774 = vmul.f32 %v773, 1.442695
    %v775 = vpow.pop %v774
    %v776 = vadd.f32 %v775, 1.0
    %v777 = vrcp.pop %v776
    %v778 = vmul.f32 1.0, %v777
    %v779 = vtanh.pop %v772
    %v780 = vmul.f32 %v778, %v585
    %782 = vrot.lane.b32.xlu0 %v779, 32
    %v783 = vpop.permute.xlu0 %782
    %v785 = vmul.f32 %v778, %v783
    %787 = vrot.lane.b32.xlu0 %v785, 32
    %v788 = vpop.permute.xlu0 %787
    %v790 = vadd.f32 %v780, %v788
    %v791 = vtanh.pop %v790
    %793 = vrot.lane.b32.xlu0 %v791, 32
    %v794 = vpop.permute.xlu0 %793
    %v796 = vmul.f32 %v778, %v794
    %798 = vrot.lane.b32.xlu0 %v796, 64
    %v799 = vpop.permute.xlu0 %798
    %802 = vrot.lane.b32.xlu0 %v697, 96
    %v803 = vpop.permute.xlu0 %802
    %v805 = vsel %vm80, %v799, %v803
    %v807 = vsel %vm190, %v805, 0
    %809 = vmatprep.subr.mxu0 0.0
    %810 = vmatpush1.msra.mxu0 %v70
    %811 = vmatprep.subr.mxu0 0.0
    %812 = vmatpush1.msra.mxu0 %v71
    %813 = vmatprep.subr.mxu0 0.0
    %814 = vmatpush1.msra.mxu0 %v72
    %815 = vmatprep.subr.mxu0 0.0
    %816 = vmatpush1.msra.mxu0 %v73
    %817 = vmatprep.subr.mxu0 0.0
    %818 = vmatpush1.msra.mxu0 %v74
    %819 = vmatprep.subr.mxu0 0.0
    %820 = vmatpush1.msra.mxu0 %v75
    %821 = vmatprep.subr.mxu0 0.0
    %822 = vmatpush1.msra.mxu0 %v76
    %823 = vmatprep.subr.mxu0 0.0
    %824 = vmatpush1.msra.mxu0 %v77
    %825 = vmatprep.subr.mxu0 0.0
    %826 = vmatpush1.msra.mxu0 0.0
    %827 = vmatprep.subr.mxu0 0.0
    %828 = vmatpush1.msra.mxu0 0.0
    %829 = vmatprep.subr.mxu0 0.0
    %830 = vmatpush1.msra.mxu0 0.0
    %831 = vmatprep.subr.mxu0 0.0
    %832 = vmatpush1.msra.mxu0 0.0
    %833 = vmatprep.subr.mxu0 0.0
    %834 = vmatpush1.msra.mxu0 0.0
    %835 = vmatprep.subr.mxu0 0.0
    %836 = vmatpush1.msra.mxu0 0.0
    %837 = vmatprep.subr.mxu0 0.0
    %838 = vmatpush1.msra.mxu0 0.0
    %839 = vmatprep.subr.mxu0 0.0
    %840 = vmatpush1.msra.mxu0 0.0
    %841 = vmatprep.subr.mxu0 0.0
    %842 = vmatpush1.msra.mxu0 0.0
    %843 = vmatprep.subr.mxu0 0.0
    %844 = vmatpush1.msra.mxu0 0.0
    %845 = vmatprep.subr.mxu0 0.0
    %846 = vmatpush1.msra.mxu0 0.0
    %847 = vmatprep.subr.mxu0 0.0
    %848 = vmatpush1.msra.mxu0 0.0
    %849 = vmatprep.subr.mxu0 0.0
    %850 = vmatpush1.msra.mxu0 0.0
    %851 = vmatprep.subr.mxu0 0.0
    %852 = vmatpush1.msra.mxu0 0.0
    %853 = vmatprep.subr.mxu0 0.0
    %854 = vmatpush1.msra.mxu0 0.0
    %855 = vmatprep.subr.mxu0 0.0
    %856 = vmatpush1.msra.mxu0 0.0
    %857 = vmatprep.subr.mxu0 0.0
    %858 = vmatpush1.msra.mxu0 0.0
    %859 = vmatprep.subr.mxu0 0.0
    %860 = vmatpush1.msra.mxu0 0.0
    %861 = vmatprep.subr.mxu0 0.0
    %862 = vmatpush1.msra.mxu0 0.0
    %863 = vmatprep.subr.mxu0 0.0
    %864 = vmatpush1.msra.mxu0 0.0
    %865 = vmatprep.subr.mxu0 0.0
    %866 = vmatpush1.msra.mxu0 0.0
    %867 = vmatprep.subr.mxu0 0.0
    %868 = vmatpush1.msra.mxu0 0.0
    %869 = vmatprep.subr.mxu0 0.0
    %870 = vmatpush1.msra.mxu0 0.0
    %871 = vmatprep.subr.mxu0 0.0
    %872 = vmatpush1.msra.mxu0 0.0
    %873 = vmatprep.mubr.f32.mxu0 0.0
    %874 = vmatmul.mubr.f32.gmra.mrb[0].mxu0 %v807
    %v875 = vpop.f32.mrb[0].mxu0
    %v876 = vadd.f32 %v188, %v875
    %v877 = vpop.f32.mrb[0].mxu0
    %878 = vdwg.mxu0
    %v879 = vxor.u32 %v876, 2147483648
    %v880 = vmul.f32 %v879, 1.442695
    %v881 = vpow.pop %v880
    %v882 = vadd.f32 %v881, 1.0
    %v883 = vrcp.pop %v882
    %v884 = vmul.f32 1.0, %v883
    %v885 = vtanh.pop %v876
    %v886 = vmul.f32 %v884, %v691
    %888 = vrot.lane.b32.xlu0 %v885, 32
    %v889 = vpop.permute.xlu0 %888
    %v891 = vmul.f32 %v884, %v889
    %893 = vrot.lane.b32.xlu0 %v891, 32
    %v894 = vpop.permute.xlu0 %893
    %v896 = vadd.f32 %v886, %v894
    %v897 = vtanh.pop %v896
    %899 = vrot.lane.b32.xlu0 %v897, 32
    %v900 = vpop.permute.xlu0 %899
    %v902 = vmul.f32 %v884, %v900
    %s903 = scalar_lea.vmem [#allocation3], 32
    %v904 = vld [vmem:[%s903] sm:$0xff]
    %v905 = vsel %vm80, %v799, 0
    %907 = vmatprep.subr.mxu0 0.0
    %908 = vmatpush1.msra.mxu0 %v66
    %909 = vmatprep.subr.mxu0 0.0
    %910 = vmatpush1.msra.mxu0 %v67
    %911 = vmatprep.subr.mxu0 0.0
    %912 = vmatpush1.msra.mxu0 %v68
    %913 = vmatprep.subr.mxu0 0.0
    %914 = vmatpush1.msra.mxu0 %v69
    %915 = vmatprep.subr.mxu0 0.0
    %916 = vmatpush1.msra.mxu0 0.0
    %917 = vmatprep.subr.mxu0 0.0
    %918 = vmatpush1.msra.mxu0 0.0
    %919 = vmatprep.subr.mxu0 0.0
    %920 = vmatpush1.msra.mxu0 0.0
    %921 = vmatprep.subr.mxu0 0.0
    %922 = vmatpush1.msra.mxu0 0.0
    %923 = vmatprep.subr.mxu0 0.0
    %924 = vmatpush1.msra.mxu0 0.0
    %925 = vmatprep.subr.mxu0 0.0
    %926 = vmatpush1.msra.mxu0 0.0
    %927 = vmatprep.subr.mxu0 0.0
    %928 = vmatpush1.msra.mxu0 0.0
    %929 = vmatprep.subr.mxu0 0.0
    %930 = vmatpush1.msra.mxu0 0.0
    %931 = vmatprep.subr.mxu0 0.0
    %932 = vmatpush1.msra.mxu0 0.0
    %933 = vmatprep.subr.mxu0 0.0
    %934 = vmatpush1.msra.mxu0 0.0
    %935 = vmatprep.subr.mxu0 0.0
    %936 = vmatpush1.msra.mxu0 0.0
    %937 = vmatprep.subr.mxu0 0.0
    %938 = vmatpush1.msra.mxu0 0.0
    %939 = vmatprep.subr.mxu0 0.0
    %940 = vmatpush1.msra.mxu0 0.0
    %941 = vmatprep.subr.mxu0 0.0
    %942 = vmatpush1.msra.mxu0 0.0
    %943 = vmatprep.subr.mxu0 0.0
    %944 = vmatpush1.msra.mxu0 0.0
    %945 = vmatprep.subr.mxu0 0.0
    %946 = vmatpush1.msra.mxu0 0.0
    %947 = vmatprep.subr.mxu0 0.0
    %948 = vmatpush1.msra.mxu0 0.0
    %949 = vmatprep.subr.mxu0 0.0
    %950 = vmatpush1.msra.mxu0 0.0
    %951 = vmatprep.subr.mxu0 0.0
    %952 = vmatpush1.msra.mxu0 0.0
    %953 = vmatprep.subr.mxu0 0.0
    %954 = vmatpush1.msra.mxu0 0.0
    %955 = vmatprep.subr.mxu0 0.0
    %956 = vmatpush1.msra.mxu0 0.0
    %957 = vmatprep.subr.mxu0 0.0
    %958 = vmatpush1.msra.mxu0 0.0
    %959 = vmatprep.subr.mxu0 0.0
    %960 = vmatpush1.msra.mxu0 0.0
    %961 = vmatprep.subr.mxu0 0.0
    %962 = vmatpush1.msra.mxu0 0.0
    %963 = vmatprep.subr.mxu0 0.0
    %964 = vmatpush1.msra.mxu0 0.0
    %965 = vmatprep.subr.mxu0 0.0
    %966 = vmatpush1.msra.mxu0 0.0
    %967 = vmatprep.subr.mxu0 0.0
    %968 = vmatpush1.msra.mxu0 0.0
    %969 = vmatprep.subr.mxu0 0.0
    %970 = vmatpush1.msra.mxu0 0.0
    %971 = vmatprep.mubr.f32.mxu0 0.0
    %972 = vmatmul.mubr.f32.gmra.mrb[0].mxu0 %v905
    %v973 = vpop.f32.mrb[0].mxu0
    %v974 = vadd.f32 0.0, %v973
    %v975 = vpop.f32.mrb[0].mxu0
    %976 = vdwg.mxu0
    %v977 = vadd.f32 %v904, %v974
    %v978 = vxor.u32 %v977, 2147483648
    %v979 = vmul.f32 %v978, 1.442695
    %v980 = vpow.pop %v979
    %v981 = vadd.f32 %v980, 1.0
    %v982 = vrcp.pop %v981
    %v983 = vmul.f32 1.0, %v982
    %v984 = vtanh.pop %v977
    %v985 = vmul.f32 %v983, %v790
    %987 = vrot.lane.b32.xlu0 %v984, 32
    %v988 = vpop.permute.xlu0 %987
    %v990 = vmul.f32 %v983, %v988
    %992 = vrot.lane.b32.xlu0 %v990, 32
    %v993 = vpop.permute.xlu0 %992
    %v995 = vadd.f32 %v985, %v993
    %v996 = vtanh.pop %v995
    %998 = vrot.lane.b32.xlu0 %v996, 32
    %v999 = vpop.permute.xlu0 %998
    %v1001 = vmul.f32 %v983, %v999
    %1003 = vrot.lane.b32.xlu0 %v1001, 64
    %v1004 = vpop.permute.xlu0 %1003
    %1007 = vrot.lane.b32.xlu0 %v902, 96
    %v1008 = vpop.permute.xlu0 %1007
    %v1010 = vsel %vm80, %v1004, %v1008
    %v1012 = vsel %vm190, %v1010, 0
    %1014 = vmatprep.subr.mxu0 0.0
    %1015 = vmatpush1.msra.mxu0 %v70
    %1016 = vmatprep.subr.mxu0 0.0
    %1017 = vmatpush1.msra.mxu0 %v71
    %1018 = vmatprep.subr.mxu0 0.0
    %1019 = vmatpush1.msra.mxu0 %v72
    %1020 = vmatprep.subr.mxu0 0.0
    %1021 = vmatpush1.msra.mxu0 %v73
    %1022 = vmatprep.subr.mxu0 0.0
    %1023 = vmatpush1.msra.mxu0 %v74
    %1024 = vmatprep.subr.mxu0 0.0
    %1025 = vmatpush1.msra.mxu0 %v75
    %1026 = vmatprep.subr.mxu0 0.0
    %1027 = vmatpush1.msra.mxu0 %v76
    %1028 = vmatprep.subr.mxu0 0.0
    %1029 = vmatpush1.msra.mxu0 %v77
    %1030 = vmatprep.subr.mxu0 0.0
    %1031 = vmatpush1.msra.mxu0 0.0
    %1032 = vmatprep.subr.mxu0 0.0
    %1033 = vmatpush1.msra.mxu0 0.0
    %1034 = vmatprep.subr.mxu0 0.0
    %1035 = vmatpush1.msra.mxu0 0.0
    %1036 = vmatprep.subr.mxu0 0.0
    %1037 = vmatpush1.msra.mxu0 0.0
    %1038 = vmatprep.subr.mxu0 0.0
    %1039 = vmatpush1.msra.mxu0 0.0
    %1040 = vmatprep.subr.mxu0 0.0
    %1041 = vmatpush1.msra.mxu0 0.0
    %1042 = vmatprep.subr.mxu0 0.0
    %1043 = vmatpush1.msra.mxu0 0.0
    %1044 = vmatprep.subr.mxu0 0.0
    %1045 = vmatpush1.msra.mxu0 0.0
    %1046 = vmatprep.subr.mxu0 0.0
    %1047 = vmatpush1.msra.mxu0 0.0
    %1048 = vmatprep.subr.mxu0 0.0
    %1049 = vmatpush1.msra.mxu0 0.0
    %1050 = vmatprep.subr.mxu0 0.0
    %1051 = vmatpush1.msra.mxu0 0.0
    %1052 = vmatprep.subr.mxu0 0.0
    %1053 = vmatpush1.msra.mxu0 0.0
    %1054 = vmatprep.subr.mxu0 0.0
    %1055 = vmatpush1.msra.mxu0 0.0
    %1056 = vmatprep.subr.mxu0 0.0
    %1057 = vmatpush1.msra.mxu0 0.0
    %1058 = vmatprep.subr.mxu0 0.0
    %1059 = vmatpush1.msra.mxu0 0.0
    %1060 = vmatprep.subr.mxu0 0.0
    %1061 = vmatpush1.msra.mxu0 0.0
    %1062 = vmatprep.subr.mxu0 0.0
    %1063 = vmatpush1.msra.mxu0 0.0
    %1064 = vmatprep.subr.mxu0 0.0
    %1065 = vmatpush1.msra.mxu0 0.0
    %1066 = vmatprep.subr.mxu0 0.0
    %1067 = vmatpush1.msra.mxu0 0.0
    %1068 = vmatprep.subr.mxu0 0.0
    %1069 = vmatpush1.msra.mxu0 0.0
    %1070 = vmatprep.subr.mxu0 0.0
    %1071 = vmatpush1.msra.mxu0 0.0
    %1072 = vmatprep.subr.mxu0 0.0
    %1073 = vmatpush1.msra.mxu0 0.0
    %1074 = vmatprep.subr.mxu0 0.0
    %1075 = vmatpush1.msra.mxu0 0.0
    %1076 = vmatprep.subr.mxu0 0.0
    %1077 = vmatpush1.msra.mxu0 0.0
    %1078 = vmatprep.mubr.f32.mxu0 0.0
    %1079 = vmatmul.mubr.f32.gmra.mrb[0].mxu0 %v1012
    %v1080 = vpop.f32.mrb[0].mxu0
    %v1081 = vadd.f32 %v188, %v1080
    %v1082 = vpop.f32.mrb[0].mxu0
    %1083 = vdwg.mxu0
    %v1084 = vxor.u32 %v1081, 2147483648
    %v1085 = vmul.f32 %v1084, 1.442695
    %v1086 = vpow.pop %v1085
    %v1087 = vadd.f32 %v1086, 1.0
    %v1088 = vrcp.pop %v1087
    %v1089 = vmul.f32 1.0, %v1088
    %v1090 = vtanh.pop %v1081
    %v1091 = vmul.f32 %v1089, %v896
    %1093 = vrot.lane.b32.xlu0 %v1090, 32
    %v1094 = vpop.permute.xlu0 %1093
    %v1096 = vmul.f32 %v1089, %v1094
    %1098 = vrot.lane.b32.xlu0 %v1096, 32
    %v1099 = vpop.permute.xlu0 %1098
    %v1101 = vadd.f32 %v1091, %v1099
    %v1102 = vtanh.pop %v1101
    %1104 = vrot.lane.b32.xlu0 %v1102, 32
    %v1105 = vpop.permute.xlu0 %1104
    %v1107 = vmul.f32 %v1089, %v1105
    %s1108 = scalar_lea.vmem [#allocation3], 40
    %v1109 = vld [vmem:[%s1108] sm:$0xff]
    %v1110 = vsel %vm80, %v1004, 0
    %1112 = vmatprep.subr.mxu0 0.0
    %1113 = vmatpush1.msra.mxu0 %v66
    %1114 = vmatprep.subr.mxu0 0.0
    %1115 = vmatpush1.msra.mxu0 %v67
    %1116 = vmatprep.subr.mxu0 0.0
    %1117 = vmatpush1.msra.mxu0 %v68
    %1118 = vmatprep.subr.mxu0 0.0
    %1119 = vmatpush1.msra.mxu0 %v69
    %1120 = vmatprep.subr.mxu0 0.0
    %1121 = vmatpush1.msra.mxu0 0.0
    %1122 = vmatprep.subr.mxu0 0.0
    %1123 = vmatpush1.msra.mxu0 0.0
    %1124 = vmatprep.subr.mxu0 0.0
    %1125 = vmatpush1.msra.mxu0 0.0
    %1126 = vmatprep.subr.mxu0 0.0
    %1127 = vmatpush1.msra.mxu0 0.0
    %1128 = vmatprep.subr.mxu0 0.0
    %1129 = vmatpush1.msra.mxu0 0.0
    %1130 = vmatprep.subr.mxu0 0.0
    %1131 = vmatpush1.msra.mxu0 0.0
    %1132 = vmatprep.subr.mxu0 0.0
    %1133 = vmatpush1.msra.mxu0 0.0
    %1134 = vmatprep.subr.mxu0 0.0
    %1135 = vmatpush1.msra.mxu0 0.0
    %1136 = vmatprep.subr.mxu0 0.0
    %1137 = vmatpush1.msra.mxu0 0.0
    %1138 = vmatprep.subr.mxu0 0.0
    %1139 = vmatpush1.msra.mxu0 0.0
    %1140 = vmatprep.subr.mxu0 0.0
    %1141 = vmatpush1.msra.mxu0 0.0
    %1142 = vmatprep.subr.mxu0 0.0
    %1143 = vmatpush1.msra.mxu0 0.0
    %1144 = vmatprep.subr.mxu0 0.0
    %1145 = vmatpush1.msra.mxu0 0.0
    %1146 = vmatprep.subr.mxu0 0.0
    %1147 = vmatpush1.msra.mxu0 0.0
    %1148 = vmatprep.subr.mxu0 0.0
    %1149 = vmatpush1.msra.mxu0 0.0
    %1150 = vmatprep.subr.mxu0 0.0
    %1151 = vmatpush1.msra.mxu0 0.0
    %1152 = vmatprep.subr.mxu0 0.0
    %1153 = vmatpush1.msra.mxu0 0.0
    %1154 = vmatprep.subr.mxu0 0.0
    %1155 = vmatpush1.msra.mxu0 0.0
    %1156 = vmatprep.subr.mxu0 0.0
    %1157 = vmatpush1.msra.mxu0 0.0
    %1158 = vmatprep.subr.mxu0 0.0
    %1159 = vmatpush1.msra.mxu0 0.0
    %1160 = vmatprep.subr.mxu0 0.0
    %1161 = vmatpush1.msra.mxu0 0.0
    %1162 = vmatprep.subr.mxu0 0.0
    %1163 = vmatpush1.msra.mxu0 0.0
    %1164 = vmatprep.subr.mxu0 0.0
    %1165 = vmatpush1.msra.mxu0 0.0
    %1166 = vmatprep.subr.mxu0 0.0
    %1167 = vmatpush1.msra.mxu0 0.0
    %1168 = vmatprep.subr.mxu0 0.0
    %1169 = vmatpush1.msra.mxu0 0.0
    %1170 = vmatprep.subr.mxu0 0.0
    %1171 = vmatpush1.msra.mxu0 0.0
    %1172 = vmatprep.subr.mxu0 0.0
    %1173 = vmatpush1.msra.mxu0 0.0
    %1174 = vmatprep.subr.mxu0 0.0
    %1175 = vmatpush1.msra.mxu0 0.0
    %1176 = vmatprep.mubr.f32.mxu0 0.0
    %1177 = vmatmul.mubr.f32.gmra.mrb[0].mxu0 %v1110
    %v1178 = vpop.f32.mrb[0].mxu0
    %v1179 = vadd.f32 0.0, %v1178
    %v1180 = vpop.f32.mrb[0].mxu0
    %1181 = vdwg.mxu0
    %v1182 = vadd.f32 %v1109, %v1179
    %v1183 = vxor.u32 %v1182, 2147483648
    %v1184 = vmul.f32 %v1183, 1.442695
    %v1185 = vpow.pop %v1184
    %v1186 = vadd.f32 %v1185, 1.0
    %v1187 = vrcp.pop %v1186
    %v1188 = vmul.f32 1.0, %v1187
    %v1189 = vtanh.pop %v1182
    %v1190 = vmul.f32 %v1188, %v995
    %1192 = vrot.lane.b32.xlu0 %v1189, 32
    %v1193 = vpop.permute.xlu0 %1192
    %v1195 = vmul.f32 %v1188, %v1193
    %1197 = vrot.lane.b32.xlu0 %v1195, 32
    %v1198 = vpop.permute.xlu0 %1197
    %v1200 = vadd.f32 %v1190, %v1198
    %v1201 = vtanh.pop %v1200
    %1203 = vrot.lane.b32.xlu0 %v1201, 32
    %v1204 = vpop.permute.xlu0 %1203
    %v1206 = vmul.f32 %v1188, %v1204
    %1208 = vrot.lane.b32.xlu0 %v1206, 64
    %v1209 = vpop.permute.xlu0 %1208
    %1212 = vrot.lane.b32.xlu0 %v1107, 96
    %v1213 = vpop.permute.xlu0 %1212
    %v1215 = vsel %vm80, %v1209, %v1213
    %v1217 = vsel %vm190, %v1215, 0
    %1219 = vmatprep.subr.mxu0 0.0
    %1220 = vmatpush1.msra.mxu0 %v70
    %1221 = vmatprep.subr.mxu0 0.0
    %1222 = vmatpush1.msra.mxu0 %v71
    %1223 = vmatprep.subr.mxu0 0.0
    %1224 = vmatpush1.msra.mxu0 %v72
    %1225 = vmatprep.subr.mxu0 0.0
    %1226 = vmatpush1.msra.mxu0 %v73
    %1227 = vmatprep.subr.mxu0 0.0
    %1228 = vmatpush1.msra.mxu0 %v74
    %1229 = vmatprep.subr.mxu0 0.0
    %1230 = vmatpush1.msra.mxu0 %v75
    %1231 = vmatprep.subr.mxu0 0.0
    %1232 = vmatpush1.msra.mxu0 %v76
    %1233 = vmatprep.subr.mxu0 0.0
    %1234 = vmatpush1.msra.mxu0 %v77
    %1235 = vmatprep.subr.mxu0 0.0
    %1236 = vmatpush1.msra.mxu0 0.0
    %1237 = vmatprep.subr.mxu0 0.0
    %1238 = vmatpush1.msra.mxu0 0.0
    %1239 = vmatprep.subr.mxu0 0.0
    %1240 = vmatpush1.msra.mxu0 0.0
    %1241 = vmatprep.subr.mxu0 0.0
    %1242 = vmatpush1.msra.mxu0 0.0
    %1243 = vmatprep.subr.mxu0 0.0
    %1244 = vmatpush1.msra.mxu0 0.0
    %1245 = vmatprep.subr.mxu0 0.0
    %1246 = vmatpush1.msra.mxu0 0.0
    %1247 = vmatprep.subr.mxu0 0.0
    %1248 = vmatpush1.msra.mxu0 0.0
    %1249 = vmatprep.subr.mxu0 0.0
    %1250 = vmatpush1.msra.mxu0 0.0
    %1251 = vmatprep.subr.mxu0 0.0
    %1252 = vmatpush1.msra.mxu0 0.0
    %1253 = vmatprep.subr.mxu0 0.0
    %1254 = vmatpush1.msra.mxu0 0.0
    %1255 = vmatprep.subr.mxu0 0.0
    %1256 = vmatpush1.msra.mxu0 0.0
    %1257 = vmatprep.subr.mxu0 0.0
    %1258 = vmatpush1.msra.mxu0 0.0
    %1259 = vmatprep.subr.mxu0 0.0
    %1260 = vmatpush1.msra.mxu0 0.0
    %1261 = vmatprep.subr.mxu0 0.0
    %1262 = vmatpush1.msra.mxu0 0.0
    %1263 = vmatprep.subr.mxu0 0.0
    %1264 = vmatpush1.msra.mxu0 0.0
    %1265 = vmatprep.subr.mxu0 0.0
    %1266 = vmatpush1.msra.mxu0 0.0
    %1267 = vmatprep.subr.mxu0 0.0
    %1268 = vmatpush1.msra.mxu0 0.0
    %1269 = vmatprep.subr.mxu0 0.0
    %1270 = vmatpush1.msra.mxu0 0.0
    %1271 = vmatprep.subr.mxu0 0.0
    %1272 = vmatpush1.msra.mxu0 0.0
    %1273 = vmatprep.subr.mxu0 0.0
    %1274 = vmatpush1.msra.mxu0 0.0
    %1275 = vmatprep.subr.mxu0 0.0
    %1276 = vmatpush1.msra.mxu0 0.0
    %1277 = vmatprep.subr.mxu0 0.0
    %1278 = vmatpush1.msra.mxu0 0.0
    %1279 = vmatprep.subr.mxu0 0.0
    %1280 = vmatpush1.msra.mxu0 0.0
    %1281 = vmatprep.subr.mxu0 0.0
    %1282 = vmatpush1.msra.mxu0 0.0
    %1283 = vmatprep.mubr.f32.mxu0 0.0
    %1284 = vmatmul.mubr.f32.gmra.mrb[0].mxu0 %v1217
    %v1285 = vpop.f32.mrb[0].mxu0
    %v1286 = vadd.f32 %v188, %v1285
    %v1287 = vpop.f32.mrb[0].mxu0
    %1288 = vdwg.mxu0
    %v1289 = vxor.u32 %v1286, 2147483648
    %v1290 = vmul.f32 %v1289, 1.442695
    %v1291 = vpow.pop %v1290
    %v1292 = vadd.f32 %v1291, 1.0
    %v1293 = vrcp.pop %v1292
    %v1294 = vmul.f32 1.0, %v1293
    %v1295 = vtanh.pop %v1286
    %v1296 = vmul.f32 %v1294, %v1101
    %1298 = vrot.lane.b32.xlu0 %v1295, 32
    %v1299 = vpop.permute.xlu0 %1298
    %v1301 = vmul.f32 %v1294, %v1299
    %1303 = vrot.lane.b32.xlu0 %v1301, 32
    %v1304 = vpop.permute.xlu0 %1303
    %v1306 = vadd.f32 %v1296, %v1304
    %v1307 = vtanh.pop %v1306
    %1309 = vrot.lane.b32.xlu0 %v1307, 32
    %v1310 = vpop.permute.xlu0 %1309
    %v1312 = vmul.f32 %v1294, %v1310
    %s1313 = scalar_lea.vmem [#allocation3], 48
    %v1314 = vld [vmem:[%s1313] sm:$0xff]
    %v1315 = vsel %vm80, %v1209, 0
    %1317 = vmatprep.subr.mxu0 0.0
    %1318 = vmatpush1.msra.mxu0 %v66
    %1319 = vmatprep.subr.mxu0 0.0
    %1320 = vmatpush1.msra.mxu0 %v67
    %1321 = vmatprep.subr.mxu0 0.0
    %1322 = vmatpush1.msra.mxu0 %v68
    %1323 = vmatprep.subr.mxu0 0.0
    %1324 = vmatpush1.msra.mxu0 %v69
    %1325 = vmatprep.subr.mxu0 0.0
    %1326 = vmatpush1.msra.mxu0 0.0
    %1327 = vmatprep.subr.mxu0 0.0
    %1328 = vmatpush1.msra.mxu0 0.0
    %1329 = vmatprep.subr.mxu0 0.0
    %1330 = vmatpush1.msra.mxu0 0.0
    %1331 = vmatprep.subr.mxu0 0.0
    %1332 = vmatpush1.msra.mxu0 0.0
    %1333 = vmatprep.subr.mxu0 0.0
    %1334 = vmatpush1.msra.mxu0 0.0
    %1335 = vmatprep.subr.mxu0 0.0
    %1336 = vmatpush1.msra.mxu0 0.0
    %1337 = vmatprep.subr.mxu0 0.0
    %1338 = vmatpush1.msra.mxu0 0.0
    %1339 = vmatprep.subr.mxu0 0.0
    %1340 = vmatpush1.msra.mxu0 0.0
    %1341 = vmatprep.subr.mxu0 0.0
    %1342 = vmatpush1.msra.mxu0 0.0
    %1343 = vmatprep.subr.mxu0 0.0
    %1344 = vmatpush1.msra.mxu0 0.0
    %1345 = vmatprep.subr.mxu0 0.0
    %1346 = vmatpush1.msra.mxu0 0.0
    %1347 = vmatprep.subr.mxu0 0.0
    %1348 = vmatpush1.msra.mxu0 0.0
    %1349 = vmatprep.subr.mxu0 0.0
    %1350 = vmatpush1.msra.mxu0 0.0
    %1351 = vmatprep.subr.mxu0 0.0
    %1352 = vmatpush1.msra.mxu0 0.0
    %1353 = vmatprep.subr.mxu0 0.0
    %1354 = vmatpush1.msra.mxu0 0.0
    %1355 = vmatprep.subr.mxu0 0.0
    %1356 = vmatpush1.msra.mxu0 0.0
    %1357 = vmatprep.subr.mxu0 0.0
    %1358 = vmatpush1.msra.mxu0 0.0
    %1359 = vmatprep.subr.mxu0 0.0
    %1360 = vmatpush1.msra.mxu0 0.0
    %1361 = vmatprep.subr.mxu0 0.0
    %1362 = vmatpush1.msra.mxu0 0.0
    %1363 = vmatprep.subr.mxu0 0.0
    %1364 = vmatpush1.msra.mxu0 0.0
    %1365 = vmatprep.subr.mxu0 0.0
    %1366 = vmatpush1.msra.mxu0 0.0
    %1367 = vmatprep.subr.mxu0 0.0
    %1368 = vmatpush1.msra.mxu0 0.0
    %1369 = vmatprep.subr.mxu0 0.0
    %1370 = vmatpush1.msra.mxu0 0.0
    %1371 = vmatprep.subr.mxu0 0.0
    %1372 = vmatpush1.msra.mxu0 0.0
    %1373 = vmatprep.subr.mxu0 0.0
    %1374 = vmatpush1.msra.mxu0 0.0
    %1375 = vmatprep.subr.mxu0 0.0
    %1376 = vmatpush1.msra.mxu0 0.0
    %1377 = vmatprep.subr.mxu0 0.0
    %1378 = vmatpush1.msra.mxu0 0.0
    %1379 = vmatprep.subr.mxu0 0.0
    %1380 = vmatpush1.msra.mxu0 0.0
    %1381 = vmatprep.mubr.f32.mxu0 0.0
    %1382 = vmatmul.mubr.f32.gmra.mrb[0].mxu0 %v1315
    %v1383 = vpop.f32.mrb[0].mxu0
    %v1384 = vadd.f32 0.0, %v1383
    %v1385 = vpop.f32.mrb[0].mxu0
    %1386 = vdwg.mxu0
    %v1387 = vadd.f32 %v1314, %v1384
    %v1388 = vxor.u32 %v1387, 2147483648
    %v1389 = vmul.f32 %v1388, 1.442695
    %v1390 = vpow.pop %v1389
    %v1391 = vadd.f32 %v1390, 1.0
    %v1392 = vrcp.pop %v1391
    %v1393 = vmul.f32 1.0, %v1392
    %v1394 = vtanh.pop %v1387
    %v1395 = vmul.f32 %v1393, %v1200
    %1397 = vrot.lane.b32.xlu0 %v1394, 32
    %v1398 = vpop.permute.xlu0 %1397
    %v1400 = vmul.f32 %v1393, %v1398
    %1402 = vrot.lane.b32.xlu0 %v1400, 32
    %v1403 = vpop.permute.xlu0 %1402
    %v1405 = vadd.f32 %v1395, %v1403
    %v1406 = vtanh.pop %v1405
    %1408 = vrot.lane.b32.xlu0 %v1406, 32
    %v1409 = vpop.permute.xlu0 %1408
    %v1411 = vmul.f32 %v1393, %v1409
    %1413 = vrot.lane.b32.xlu0 %v1411, 64
    %v1414 = vpop.permute.xlu0 %1413
    %1417 = vrot.lane.b32.xlu0 %v1312, 96
    %v1418 = vpop.permute.xlu0 %1417
    %v1420 = vsel %vm80, %v1414, %v1418
    %v1422 = vsel %vm190, %v1420, 0
    %1424 = vmatprep.subr.mxu0 0.0
    %1425 = vmatpush1.msra.mxu0 %v70
    %1426 = vmatprep.subr.mxu0 0.0
    %1427 = vmatpush1.msra.mxu0 %v71
    %1428 = vmatprep.subr.mxu0 0.0
    %1429 = vmatpush1.msra.mxu0 %v72
    %1430 = vmatprep.subr.mxu0 0.0
    %1431 = vmatpush1.msra.mxu0 %v73
    %1432 = vmatprep.subr.mxu0 0.0
    %1433 = vmatpush1.msra.mxu0 %v74
    %1434 = vmatprep.subr.mxu0 0.0
    %1435 = vmatpush1.msra.mxu0 %v75
    %1436 = vmatprep.subr.mxu0 0.0
    %1437 = vmatpush1.msra.mxu0 %v76
    %1438 = vmatprep.subr.mxu0 0.0
    %1439 = vmatpush1.msra.mxu0 %v77
    %1440 = vmatprep.subr.mxu0 0.0
    %1441 = vmatpush1.msra.mxu0 0.0
    %1442 = vmatprep.subr.mxu0 0.0
    %1443 = vmatpush1.msra.mxu0 0.0
    %1444 = vmatprep.subr.mxu0 0.0
    %1445 = vmatpush1.msra.mxu0 0.0
    %1446 = vmatprep.subr.mxu0 0.0
    %1447 = vmatpush1.msra.mxu0 0.0
    %1448 = vmatprep.subr.mxu0 0.0
    %1449 = vmatpush1.msra.mxu0 0.0
    %1450 = vmatprep.subr.mxu0 0.0
    %1451 = vmatpush1.msra.mxu0 0.0
    %1452 = vmatprep.subr.mxu0 0.0
    %1453 = vmatpush1.msra.mxu0 0.0
    %1454 = vmatprep.subr.mxu0 0.0
    %1455 = vmatpush1.msra.mxu0 0.0
    %1456 = vmatprep.subr.mxu0 0.0
    %1457 = vmatpush1.msra.mxu0 0.0
    %1458 = vmatprep.subr.mxu0 0.0
    %1459 = vmatpush1.msra.mxu0 0.0
    %1460 = vmatprep.subr.mxu0 0.0
    %1461 = vmatpush1.msra.mxu0 0.0
    %1462 = vmatprep.subr.mxu0 0.0
    %1463 = vmatpush1.msra.mxu0 0.0
    %1464 = vmatprep.subr.mxu0 0.0
    %1465 = vmatpush1.msra.mxu0 0.0
    %1466 = vmatprep.subr.mxu0 0.0
    %1467 = vmatpush1.msra.mxu0 0.0
    %1468 = vmatprep.subr.mxu0 0.0
    %1469 = vmatpush1.msra.mxu0 0.0
    %1470 = vmatprep.subr.mxu0 0.0
    %1471 = vmatpush1.msra.mxu0 0.0
    %1472 = vmatprep.subr.mxu0 0.0
    %1473 = vmatpush1.msra.mxu0 0.0
    %1474 = vmatprep.subr.mxu0 0.0
    %1475 = vmatpush1.msra.mxu0 0.0
    %1476 = vmatprep.subr.mxu0 0.0
    %1477 = vmatpush1.msra.mxu0 0.0
    %1478 = vmatprep.subr.mxu0 0.0
    %1479 = vmatpush1.msra.mxu0 0.0
    %1480 = vmatprep.subr.mxu0 0.0
    %1481 = vmatpush1.msra.mxu0 0.0
    %1482 = vmatprep.subr.mxu0 0.0
    %1483 = vmatpush1.msra.mxu0 0.0
    %1484 = vmatprep.subr.mxu0 0.0
    %1485 = vmatpush1.msra.mxu0 0.0
    %1486 = vmatprep.subr.mxu0 0.0
    %1487 = vmatpush1.msra.mxu0 0.0
    %1488 = vmatprep.mubr.f32.mxu0 0.0
    %1489 = vmatmul.mubr.f32.gmra.mrb[0].mxu0 %v1422
    %v1490 = vpop.f32.mrb[0].mxu0
    %v1491 = vadd.f32 %v188, %v1490
    %v1492 = vpop.f32.mrb[0].mxu0
    %1493 = vdwg.mxu0
    %v1494 = vxor.u32 %v1491, 2147483648
    %v1495 = vmul.f32 %v1494, 1.442695
    %v1496 = vpow.pop %v1495
    %v1497 = vadd.f32 %v1496, 1.0
    %v1498 = vrcp.pop %v1497
    %v1499 = vmul.f32 1.0, %v1498
    %v1500 = vtanh.pop %v1491
    %v1501 = vmul.f32 %v1499, %v1306
    %1503 = vrot.lane.b32.xlu0 %v1500, 32
    %v1504 = vpop.permute.xlu0 %1503
    %v1506 = vmul.f32 %v1499, %v1504
    %1508 = vrot.lane.b32.xlu0 %v1506, 32
    %v1509 = vpop.permute.xlu0 %1508
    %v1511 = vadd.f32 %v1501, %v1509
    %v1512 = vtanh.pop %v1511
    %1514 = vrot.lane.b32.xlu0 %v1512, 32
    %v1515 = vpop.permute.xlu0 %1514
    %v1517 = vmul.f32 %v1499, %v1515
    %s1518 = scalar_lea.vmem [#allocation3], 56
    %v1519 = vld [vmem:[%s1518] sm:$0xff]
    %v1520 = vsel %vm80, %v1414, 0
    %1522 = vmatprep.subr.mxu0 0.0
    %1523 = vmatpush1.msra.mxu0 %v66
    %1524 = vmatprep.subr.mxu0 0.0
    %1525 = vmatpush1.msra.mxu0 %v67
    %1526 = vmatprep.subr.mxu0 0.0
    %1527 = vmatpush1.msra.mxu0 %v68
    %1528 = vmatprep.subr.mxu0 0.0
    %1529 = vmatpush1.msra.mxu0 %v69
    %1530 = vmatprep.subr.mxu0 0.0
    %1531 = vmatpush1.msra.mxu0 0.0
    %1532 = vmatprep.subr.mxu0 0.0
    %1533 = vmatpush1.msra.mxu0 0.0
    %1534 = vmatprep.subr.mxu0 0.0
    %1535 = vmatpush1.msra.mxu0 0.0
    %1536 = vmatprep.subr.mxu0 0.0
    %1537 = vmatpush1.msra.mxu0 0.0
    %1538 = vmatprep.subr.mxu0 0.0
    %1539 = vmatpush1.msra.mxu0 0.0
    %1540 = vmatprep.subr.mxu0 0.0
    %1541 = vmatpush1.msra.mxu0 0.0
    %1542 = vmatprep.subr.mxu0 0.0
    %1543 = vmatpush1.msra.mxu0 0.0
    %1544 = vmatprep.subr.mxu0 0.0
    %1545 = vmatpush1.msra.mxu0 0.0
    %1546 = vmatprep.subr.mxu0 0.0
    %1547 = vmatpush1.msra.mxu0 0.0
    %1548 = vmatprep.subr.mxu0 0.0
    %1549 = vmatpush1.msra.mxu0 0.0
    %1550 = vmatprep.subr.mxu0 0.0
    %1551 = vmatpush1.msra.mxu0 0.0
    %1552 = vmatprep.subr.mxu0 0.0
    %1553 = vmatpush1.msra.mxu0 0.0
    %1554 = vmatprep.subr.mxu0 0.0
    %1555 = vmatpush1.msra.mxu0 0.0
    %1556 = vmatprep.subr.mxu0 0.0
    %1557 = vmatpush1.msra.mxu0 0.0
    %1558 = vmatprep.subr.mxu0 0.0
    %1559 = vmatpush1.msra.mxu0 0.0
    %1560 = vmatprep.subr.mxu0 0.0
    %1561 = vmatpush1.msra.mxu0 0.0
    %1562 = vmatprep.subr.mxu0 0.0
    %1563 = vmatpush1.msra.mxu0 0.0
    %1564 = vmatprep.subr.mxu0 0.0
    %1565 = vmatpush1.msra.mxu0 0.0
    %1566 = vmatprep.subr.mxu0 0.0
    %1567 = vmatpush1.msra.mxu0 0.0
    %1568 = vmatprep.subr.mxu0 0.0
    %1569 = vmatpush1.msra.mxu0 0.0
    %1570 = vmatprep.subr.mxu0 0.0
    %1571 = vmatpush1.msra.mxu0 0.0
    %1572 = vmatprep.subr.mxu0 0.0
    %1573 = vmatpush1.msra.mxu0 0.0
    %1574 = vmatprep.subr.mxu0 0.0
    %1575 = vmatpush1.msra.mxu0 0.0
    %1576 = vmatprep.subr.mxu0 0.0
    %1577 = vmatpush1.msra.mxu0 0.0
    %1578 = vmatprep.subr.mxu0 0.0
    %1579 = vmatpush1.msra.mxu0 0.0
    %1580 = vmatprep.subr.mxu0 0.0
    %1581 = vmatpush1.msra.mxu0 0.0
    %1582 = vmatprep.subr.mxu0 0.0
    %1583 = vmatpush1.msra.mxu0 0.0
    %1584 = vmatprep.subr.mxu0 0.0
    %1585 = vmatpush1.msra.mxu0 0.0
    %1586 = vmatprep.mubr.f32.mxu0 0.0
    %1587 = vmatmul.mubr.f32.gmra.mrb[0].mxu0 %v1520
    %v1588 = vpop.f32.mrb[0].mxu0
    %v1589 = vadd.f32 0.0, %v1588
    %v1590 = vpop.f32.mrb[0].mxu0
    %1591 = vdwg.mxu0
    %v1592 = vadd.f32 %v1519, %v1589
    %v1593 = vxor.u32 %v1592, 2147483648
    %v1594 = vmul.f32 %v1593, 1.442695
    %v1595 = vpow.pop %v1594
    %v1596 = vadd.f32 %v1595, 1.0
    %v1597 = vrcp.pop %v1596
    %v1598 = vmul.f32 1.0, %v1597
    %v1599 = vtanh.pop %v1592
    %v1600 = vmul.f32 %v1598, %v1405
    %1602 = vrot.lane.b32.xlu0 %v1599, 32
    %v1603 = vpop.permute.xlu0 %1602
    %v1605 = vmul.f32 %v1598, %v1603
    %1607 = vrot.lane.b32.xlu0 %v1605, 32
    %v1608 = vpop.permute.xlu0 %1607
    %v1610 = vadd.f32 %v1600, %v1608
    %v1611 = vtanh.pop %v1610
    %1613 = vrot.lane.b32.xlu0 %v1611, 32
    %v1614 = vpop.permute.xlu0 %1613
    %v1616 = vmul.f32 %v1598, %v1614
    %1618 = vrot.lane.b32.xlu0 %v1616, 64
    %v1619 = vpop.permute.xlu0 %1618
    %1622 = vrot.lane.b32.xlu0 %v1517, 96
    %v1623 = vpop.permute.xlu0 %1622
    %v1625 = vsel %vm80, %v1619, %v1623
    %v1627 = vsel %vm190, %v1625, 0
    %1629 = vmatprep.subr.mxu0 0.0
    %1630 = vmatpush1.msra.mxu0 %v70
    %1631 = vmatprep.subr.mxu0 0.0
    %1632 = vmatpush1.msra.mxu0 %v71
    %1633 = vmatprep.subr.mxu0 0.0
    %1634 = vmatpush1.msra.mxu0 %v72
    %1635 = vmatprep.subr.mxu0 0.0
    %1636 = vmatpush1.msra.mxu0 %v73
    %1637 = vmatprep.subr.mxu0 0.0
    %1638 = vmatpush1.msra.mxu0 %v74
    %1639 = vmatprep.subr.mxu0 0.0
    %1640 = vmatpush1.msra.mxu0 %v75
    %1641 = vmatprep.subr.mxu0 0.0
    %1642 = vmatpush1.msra.mxu0 %v76
    %1643 = vmatprep.subr.mxu0 0.0
    %1644 = vmatpush1.msra.mxu0 %v77
    %1645 = vmatprep.subr.mxu0 0.0
    %1646 = vmatpush1.msra.mxu0 0.0
    %1647 = vmatprep.subr.mxu0 0.0
    %1648 = vmatpush1.msra.mxu0 0.0
    %1649 = vmatprep.subr.mxu0 0.0
    %1650 = vmatpush1.msra.mxu0 0.0
    %1651 = vmatprep.subr.mxu0 0.0
    %1652 = vmatpush1.msra.mxu0 0.0
    %1653 = vmatprep.subr.mxu0 0.0
    %1654 = vmatpush1.msra.mxu0 0.0
    %1655 = vmatprep.subr.mxu0 0.0
    %1656 = vmatpush1.msra.mxu0 0.0
    %1657 = vmatprep.subr.mxu0 0.0
    %1658 = vmatpush1.msra.mxu0 0.0
    %1659 = vmatprep.subr.mxu0 0.0
    %1660 = vmatpush1.msra.mxu0 0.0
    %1661 = vmatprep.subr.mxu0 0.0
    %1662 = vmatpush1.msra.mxu0 0.0
    %1663 = vmatprep.subr.mxu0 0.0
    %1664 = vmatpush1.msra.mxu0 0.0
    %1665 = vmatprep.subr.mxu0 0.0
    %1666 = vmatpush1.msra.mxu0 0.0
    %1667 = vmatprep.subr.mxu0 0.0
    %1668 = vmatpush1.msra.mxu0 0.0
    %1669 = vmatprep.subr.mxu0 0.0
    %1670 = vmatpush1.msra.mxu0 0.0
    %1671 = vmatprep.subr.mxu0 0.0
    %1672 = vmatpush1.msra.mxu0 0.0
    %1673 = vmatprep.subr.mxu0 0.0
    %1674 = vmatpush1.msra.mxu0 0.0
    %1675 = vmatprep.subr.mxu0 0.0
    %1676 = vmatpush1.msra.mxu0 0.0
    %1677 = vmatprep.subr.mxu0 0.0
    %1678 = vmatpush1.msra.mxu0 0.0
    %1679 = vmatprep.subr.mxu0 0.0
    %1680 = vmatpush1.msra.mxu0 0.0
    %1681 = vmatprep.subr.mxu0 0.0
    %1682 = vmatpush1.msra.mxu0 0.0
    %1683 = vmatprep.subr.mxu0 0.0
    %1684 = vmatpush1.msra.mxu0 0.0
    %1685 = vmatprep.subr.mxu0 0.0
    %1686 = vmatpush1.msra.mxu0 0.0
    %1687 = vmatprep.subr.mxu0 0.0
    %1688 = vmatpush1.msra.mxu0 0.0
    %1689 = vmatprep.subr.mxu0 0.0
    %1690 = vmatpush1.msra.mxu0 0.0
    %1691 = vmatprep.subr.mxu0 0.0
    %1692 = vmatpush1.msra.mxu0 0.0
    %1693 = vmatprep.mubr.f32.mxu0 0.0
    %1694 = vmatmul.mubr.f32.gmra.mrb[0].mxu0 %v1627
    %v1695 = vpop.f32.mrb[0].mxu0
    %v1696 = vadd.f32 %v188, %v1695
    %v1697 = vpop.f32.mrb[0].mxu0
    %1698 = vdwg.mxu0
    %v1699 = vxor.u32 %v1696, 2147483648
    %v1700 = vmul.f32 %v1699, 1.442695
    %v1701 = vpow.pop %v1700
    %v1702 = vadd.f32 %v1701, 1.0
    %v1703 = vrcp.pop %v1702
    %v1704 = vmul.f32 1.0, %v1703
    %v1705 = vtanh.pop %v1696
    %v1706 = vmul.f32 %v1704, %v1511
    %1708 = vrot.lane.b32.xlu0 %v1705, 32
    %v1709 = vpop.permute.xlu0 %1708
    %v1711 = vmul.f32 %v1704, %v1709
    %1713 = vrot.lane.b32.xlu0 %v1711, 32
    %v1714 = vpop.permute.xlu0 %1713
    %v1716 = vadd.f32 %v1706, %v1714
    %v1717 = vtanh.pop %v1716
    %1719 = vrot.lane.b32.xlu0 %v1717, 32
    %v1720 = vpop.permute.xlu0 %1719
    %v1722 = vmul.f32 %v1704, %v1720
    %v1723 = vld [vmem:[%s4] sm:$0x1]
    %v1725 = vlaneseq
    %v1726 = vshrl.u32 %v1725, 7
    %v1727 = vsub.s32 0, %v1726
    %v1728 = vrot.slane %v1723, %v1727
    %1729 = vrot.lane.b32.xlu0 %v1728, 64
    %v1730 = vpop.permute.xlu0 %1729
    %v1732 = vmul.f32 %v1722, %v1730
    %1734 = vrot.lane.b32.xlu0 %v1732, 64
    %v1735 = vpop.permute.xlu0 %1734
    %v1737 = vsel %vm80, %v1735, 0.0
    %1738 = vadd.xlane.f32.xlu0 %v1737
    %v1739 = vpop.xlane.xlu0 %1738
    %v1740 = vld [vmem:[#allocation2] sm:$0x1]
    %v1742 = vlaneseq
    %v1743 = vshrl.u32 %v1742, 7
    %v1744 = vsub.s32 0, %v1743
    %v1745 = vrot.slane %v1740, %v1744
    %v1747 = vadd.f32 %v1739, %v1745
    %vm1748 = vcmask 7168
    %1749 = vst.msk [vmem:[%s6] sm:$0xff] %vm1748, %v1747
    // Predicated region
    $region38: #{tpu_custom_call.1} parent=1 // pred_check
      _
    $region39: #{tpu_custom_call.1} parent=1 // pred_check_branch
      %1751 = sbr.rel (0) target = $region41
    $region40: #{tpu_custom_call.1} parent=1 // pred_region
      _
    $region41: #{tpu_custom_call.1} parent=1 // pred_fallthru
      _
    // Predicated region
    $region42: #{tpu_custom_call.1} parent=1 // pred_check
      _
    $region43: #{tpu_custom_call.1} parent=1 // pred_check_branch
      %1753 = sbr.rel (0) target = $region45
    $region44: #{tpu_custom_call.1} parent=1 // pred_region
      _
    $region45: #{tpu_custom_call.1} parent=1 // pred_fallthru
      _
    %1754 = vsyncpa [#allocation4], 1
    %1755 = vsyncpa [#allocation6], 1

</llo_original>
